<compile_context>
chip_gen: v7x
topology: tpu7x:2x2x1
jax: 0.10.0
libtpu: 0.0.40
codegen_flags: <defaults>
</compile_context>

<pallas_src>
import functools

import jax
import jax.numpy as jnp
from jax.experimental import pallas as pl
from jax.experimental.pallas import tpu as pltpu


def _layernorm(v, gamma, beta, eps=1e-5):
    mu = jnp.mean(v, axis=-1, keepdims=True)
    var = jnp.mean((v - mu) ** 2, axis=-1, keepdims=True)
    return (v - mu) * jax.lax.rsqrt(var + eps) * gamma + beta


def _self_attn_block_kernel(
    x_ref,
    n1w_ref, n1b_ref,
    qkvw_ref, qkvb_ref,
    ow_ref, ob_ref,
    n2w_ref, n2b_ref,
    f1w_ref, f1b_ref,
    f2w_ref, f2b_ref,
    o_ref,
    *, num_heads: int,
):
    x = x_ref[0].astype(jnp.float32)          # (S, E) residual path kept in f32
    S, E = x.shape
    H = num_heads
    D = E // H

    # ---- attention branch: x + out_proj(attn(norm1(x))) -------------------
    xn = _layernorm(x, n1w_ref[...], n1b_ref[...])                        # (S, E) f32

    # One wide QKV matmul (MXU output width 3E), bf16 operands, f32 accumulate.
    # The 1/sqrt(D) scale is already folded into the Q columns by the wrapper.
    qkv = jnp.dot(xn.astype(jnp.bfloat16), qkvw_ref[...],
                  preferred_element_type=jnp.float32) + qkvb_ref[...]     # (S, 3E) f32

    q2 = qkv[:, 0:E]
    k2 = qkv[:, E:2 * E]
    v2 = qkv[:, 2 * E:3 * E]

    # Regroup heads onto a leading (major) batch axis.  Stacking along a new
    # major axis is a cheap tile copy; the hot-path matmuls below are fully
    # head-batched instead of H narrow per-head MXU calls.
    def to_heads(t):
        return jnp.stack([t[:, h * D:(h + 1) * D] for h in range(H)],
                         axis=0).astype(jnp.bfloat16)                     # (H, S, D)

    q_h = to_heads(q2)
    k_h = to_heads(k2)
    v_h = to_heads(v2)

    # Head-batched attention (flash-style einsums); softmax math in f32.
    s = jnp.einsum('hqd,hkd->hqk', q_h, k_h,
                   preferred_element_type=jnp.float32)                    # (H, S, S)
    s_max = jnp.max(s, axis=-1, keepdims=True)
    p = jnp.exp(s - s_max)
    denom = jnp.sum(p, axis=-1, keepdims=True)
    p = p * pl.reciprocal(denom, approx=True)        # EUP reciprocal, not VPU divide
    y_h = jnp.einsum('hqk,hkd->hqd', p.astype(jnp.bfloat16), v_h,
                     preferred_element_type=jnp.float32)                  # (H, S, D)

    y = jnp.concatenate([y_h[h] for h in range(H)], axis=-1)              # (S, E)

    y = jnp.dot(y.astype(jnp.bfloat16), ow_ref[...],
                preferred_element_type=jnp.float32) + ob_ref[...]         # out proj
    x = x + y                                                             # residual 1

    # ---- feed-forward branch: x + ff2(relu(ff1(norm2(x)))) ----------------
    xn2 = _layernorm(x, n2w_ref[...], n2b_ref[...])
    ff = jnp.dot(xn2.astype(jnp.bfloat16), f1w_ref[...],
                 preferred_element_type=jnp.float32) + f1b_ref[...]
    ff = jnp.maximum(ff, 0.0)                                             # ReLU (f32)
    ff = jnp.dot(ff.astype(jnp.bfloat16), f2w_ref[...],
                 preferred_element_type=jnp.float32) + f2b_ref[...]
    x = x + ff                                                            # residual 2

    o_ref[0] = x.astype(o_ref.dtype)


def self_attn_block(x, params, *, num_heads):
    """x: (B, S, E) float32; params: dict of f32 weights (see init_params)."""
    B, S, E = x.shape
    D = E // num_heads
    scale = 1.0 / (D ** 0.5)

    # Fold the attention scale into the Q slice of the QKV projection and ship
    # the big matmul weights as bf16 (kernel accumulates in f32).
    qkvw = params["qkvw"].at[:, :E].multiply(scale).astype(jnp.bfloat16)
    qkvb = params["qkvb"].at[:, :E].multiply(scale)

    weight_args = [
        params["n1w"], params["n1b"],
        qkvw, qkvb,
        params["ow"].astype(jnp.bfloat16), params["ob"],
        params["n2w"], params["n2b"],
        params["f1w"].astype(jnp.bfloat16), params["f1b"],
        params["f2w"].astype(jnp.bfloat16), params["f2b"],
    ]

    def full_spec(arr):
        # whole array resident every grid step (constant block index)
        return pl.BlockSpec(arr.shape, lambda b: tuple(0 for _ in arr.shape))

    in_specs = [pl.BlockSpec((1, S, E), lambda b: (b, 0, 0))]
    in_specs += [full_spec(w) for w in weight_args]

    kernel = functools.partial(_self_attn_block_kernel, num_heads=num_heads)

    return pl.pallas_call(
        kernel,
        out_shape=jax.ShapeDtypeStruct((B, S, E), jnp.float32),
        grid=(B,),
        in_specs=in_specs,
        out_specs=pl.BlockSpec((1, S, E), lambda b: (b, 0, 0)),
        compiler_params=pltpu.CompilerParams(
            dimension_semantics=("parallel",),
            vmem_limit_bytes=64 * 1024 * 1024,
        ),
    )(x, *weight_args)


def init_params(key, emb_dim, mlp_dim):
    """Deterministic synthetic parameter init (matches PyTorch shapes;
    weights are stored already transposed for (x @ W) use)."""
    ks = jax.random.split(key, 6)
    std = 0.02
    return {
        # LayerNorm 1 / 2
        "n1w": jnp.ones((1, emb_dim), jnp.float32),
        "n1b": jnp.zeros((1, emb_dim), jnp.float32),
        "n2w": jnp.ones((1, emb_dim), jnp.float32),
        "n2b": jnp.zeros((1, emb_dim), jnp.float32),
        # qkv: Linear(emb_dim, 3*emb_dim)
        "qkvw": std * jax.random.normal(ks[0], (emb_dim, 3 * emb_dim), jnp.float32),
        "qkvb": std * jax.random.normal(ks[1], (1, 3 * emb_dim), jnp.float32),
        # out: Linear(emb_dim, emb_dim)
        "ow": std * jax.random.normal(ks[2], (emb_dim, emb_dim), jnp.float32),
        "ob": std * jax.random.normal(ks[3], (1, emb_dim), jnp.float32),
        # ff1: Linear(emb_dim, mlp_dim), ff2: Linear(mlp_dim, emb_dim)
        "f1w": std * jax.random.normal(ks[4], (emb_dim, mlp_dim), jnp.float32),
        "f1b": jnp.zeros((1, mlp_dim), jnp.float32),
        "f2w": std * jax.random.normal(ks[5], (mlp_dim, emb_dim), jnp.float32),
        "f2b": jnp.zeros((1, emb_dim), jnp.float32),
    }


def _reference(x, p, num_heads):
    """Pure-JAX f32 reference of SelfAttnBlock.forward (eval-mode dropout)."""
    B, S, E = x.shape
    D = E // num_heads

    def ln(v, g, b):
        mu = v.mean(-1, keepdims=True)
        var = ((v - mu) ** 2).mean(-1, keepdims=True)
        return (v - mu) / jnp.sqrt(var + 1e-5) * g + b

    xn = ln(x, p["n1w"], p["n1b"])
    qkv = xn @ p["qkvw"] + p["qkvb"]
    q, k, v = jnp.split(qkv, 3, axis=-1)
    q = q.reshape(B, S, num_heads, D).transpose(0, 2, 1, 3)
    k = k.reshape(B, S, num_heads, D).transpose(0, 2, 1, 3)
    v = v.reshape(B, S, num_heads, D).transpose(0, 2, 1, 3)
    s = jnp.einsum("bhqd,bhkd->bhqk", q, k) / jnp.sqrt(D)
    a = jax.nn.softmax(s, axis=-1)
    y = jnp.einsum("bhqk,bhkd->bhqd", a, v).transpose(0, 2, 1, 3).reshape(B, S, E)
    y = y @ p["ow"] + p["ob"]
    x = x + y
    xn2 = ln(x, p["n2w"], p["n2b"])
    ff = jnp.maximum(xn2 @ p["f1w"] + p["f1b"], 0.0)
    ff = ff @ p["f2w"] + p["f2b"]
    return x + ff


if __name__ == "__main__":
    B, S, E, H = 2, 8, 32, 4
    M = 3 * E  # mlp_dim

    key = jax.random.PRNGKey(0)
    kx, kp = jax.random.split(key)
    x = jax.random.normal(kx, (B, S, E), jnp.float32)
    params = init_params(kp, E, M)

    out = self_attn_block(x, params, num_heads=H)
    out = jax.block_until_ready(out)

    ref = _reference(x, params, H)
    assert out.shape == (B, S, E)
    # bf16 matmul operands + approx reciprocal -> compare against f32 reference
    # with a correspondingly looser tolerance.
    assert jnp.allclose(out, ref, atol=2e-2, rtol=2e-2), (
        float(jnp.max(jnp.abs(out - ref))))

    print("KERNEL_OK")
</pallas_src>

<mosaic_0001>
module attributes {stable_mosaic.version = 11 : i64} {
  func.func @_self_attn_block_kernel(%arg0: i32, %arg1: memref<1x8x32xf32, #tpu.memory_space<vmem>>, %arg2: memref<1x32xf32, #tpu.memory_space<vmem>>, %arg3: memref<1x32xf32, #tpu.memory_space<vmem>>, %arg4: memref<32x96xbf16, #tpu.memory_space<vmem>>, %arg5: memref<1x96xf32, #tpu.memory_space<vmem>>, %arg6: memref<32x32xbf16, #tpu.memory_space<vmem>>, %arg7: memref<1x32xf32, #tpu.memory_space<vmem>>, %arg8: memref<1x32xf32, #tpu.memory_space<vmem>>, %arg9: memref<1x32xf32, #tpu.memory_space<vmem>>, %arg10: memref<32x96xbf16, #tpu.memory_space<vmem>>, %arg11: memref<1x96xf32, #tpu.memory_space<vmem>>, %arg12: memref<96x32xbf16, #tpu.memory_space<vmem>>, %arg13: memref<1x32xf32, #tpu.memory_space<vmem>>, %arg14: memref<1x8x32xf32, #tpu.memory_space<vmem>>) attributes {dimension_semantics = [#tpu.dimension_semantics<parallel>], iteration_bounds = array<i64: 2>, scalar_prefetch = 0 : i64, scratch_operands = 0 : i64, tpu.core_type = #tpu.core_type<tc>, window_params = [{transform_indices = @transform_0, window_bounds = array<i64: 1, 8, 32>}, {pipeline_mode = #tpu.pipeline_mode<synchronous>, transform_indices = @transform_1, window_bounds = array<i64: 1, 32>}, {pipeline_mode = #tpu.pipeline_mode<synchronous>, transform_indices = @transform_2, window_bounds = array<i64: 1, 32>}, {pipeline_mode = #tpu.pipeline_mode<synchronous>, transform_indices = @transform_3, window_bounds = array<i64: 32, 96>}, {pipeline_mode = #tpu.pipeline_mode<synchronous>, transform_indices = @transform_4, window_bounds = array<i64: 1, 96>}, {pipeline_mode = #tpu.pipeline_mode<synchronous>, transform_indices = @transform_5, window_bounds = array<i64: 32, 32>}, {pipeline_mode = #tpu.pipeline_mode<synchronous>, transform_indices = @transform_6, window_bounds = array<i64: 1, 32>}, {pipeline_mode = #tpu.pipeline_mode<synchronous>, transform_indices = @transform_7, window_bounds = array<i64: 1, 32>}, {pipeline_mode = #tpu.pipeline_mode<synchronous>, transform_indices = @transform_8, window_bounds = array<i64: 1, 32>}, {pipeline_mode = #tpu.pipeline_mode<synchronous>, transform_indices = @transform_9, window_bounds = array<i64: 32, 96>}, {pipeline_mode = #tpu.pipeline_mode<synchronous>, transform_indices = @transform_10, window_bounds = array<i64: 1, 96>}, {pipeline_mode = #tpu.pipeline_mode<synchronous>, transform_indices = @transform_11, window_bounds = array<i64: 96, 32>}, {pipeline_mode = #tpu.pipeline_mode<synchronous>, transform_indices = @transform_12, window_bounds = array<i64: 1, 32>}, {transform_indices = @transform_13, window_bounds = array<i64: 1, 8, 32>}]} {
    %c0 = arith.constant 0 : index
    %c0_0 = arith.constant 0 : index
    %c0_1 = arith.constant 0 : index
    %0 = vector.load %arg1[%c0, %c0_0, %c0_1] : memref<1x8x32xf32, #tpu.memory_space<vmem>>, vector<1x8x32xf32>
    %1 = vector.shape_cast %0 : vector<1x8x32xf32> to vector<8x32xf32>
    %c0_2 = arith.constant 0 : index
    %c0_3 = arith.constant 0 : index
    %2 = vector.load %arg2[%c0_2, %c0_3] : memref<1x32xf32, #tpu.memory_space<vmem>>, vector<1x32xf32>
    %c0_4 = arith.constant 0 : index
    %c0_5 = arith.constant 0 : index
    %3 = vector.load %arg3[%c0_4, %c0_5] : memref<1x32xf32, #tpu.memory_space<vmem>>, vector<1x32xf32>
    %cst = arith.constant dense<0.000000e+00> : vector<8xf32>
    %4 = vector.multi_reduction <add>, %1, %cst [1] : vector<8x32xf32> to vector<8xf32>
    %5 = vector.shape_cast %4 : vector<8xf32> to vector<8x1xf32>
    %cst_6 = arith.constant 3.200000e+01 : f32
    %6 = vector.broadcast %cst_6 : f32 to vector<8x1xf32>
    %7 = arith.divf %5, %6 : vector<8x1xf32>
    %8 = vector.broadcast %7 : vector<8x1xf32> to vector<8x32xf32>
    %9 = arith.subf %1, %8 : vector<8x32xf32>
    %10 = arith.mulf %9, %9 : vector<8x32xf32>
    %cst_7 = arith.constant dense<0.000000e+00> : vector<8xf32>
    %11 = vector.multi_reduction <add>, %10, %cst_7 [1] : vector<8x32xf32> to vector<8xf32>
    %12 = vector.shape_cast %11 : vector<8xf32> to vector<8x1xf32>
    %cst_8 = arith.constant 3.200000e+01 : f32
    %13 = vector.broadcast %cst_8 : f32 to vector<8x1xf32>
    %14 = arith.divf %12, %13 : vector<8x1xf32>
    %15 = vector.broadcast %7 : vector<8x1xf32> to vector<8x32xf32>
    %16 = arith.subf %1, %15 : vector<8x32xf32>
    %cst_9 = arith.constant 9.99999974E-6 : f32
    %17 = vector.broadcast %cst_9 : f32 to vector<8x1xf32>
    %18 = arith.addf %14, %17 : vector<8x1xf32>
    %19 = math.rsqrt %18 : vector<8x1xf32>
    %20 = vector.broadcast %19 : vector<8x1xf32> to vector<8x32xf32>
    %21 = arith.mulf %16, %20 : vector<8x32xf32>
    %22 = vector.broadcast %2 : vector<1x32xf32> to vector<8x32xf32>
    %23 = arith.mulf %21, %22 : vector<8x32xf32>
    %24 = vector.broadcast %3 : vector<1x32xf32> to vector<8x32xf32>
    %25 = arith.addf %23, %24 : vector<8x32xf32>
    %26 = arith.truncf %25 : vector<8x32xf32> to vector<8x32xbf16>
    %c0_10 = arith.constant 0 : index
    %c0_11 = arith.constant 0 : index
    %27 = vector.load %arg4[%c0_10, %c0_11] : memref<32x96xbf16, #tpu.memory_space<vmem>>, vector<32x96xbf16>
    %cst_12 = arith.constant dense<0.000000e+00> : vector<8x96xf32>
    %28 = tpu.matmul %26, %27, %cst_12 {dimension_numbers = #tpu.dot_dimension_numbers<[1], [0], [0], [1], [0, 0, 1, 1], [], []>} : vector<8x32xbf16>, vector<32x96xbf16>, vector<8x96xf32> -> vector<8x96xf32>
    %c0_13 = arith.constant 0 : index
    %c0_14 = arith.constant 0 : index
    %29 = vector.load %arg5[%c0_13, %c0_14] : memref<1x96xf32, #tpu.memory_space<vmem>>, vector<1x96xf32>
    %30 = vector.broadcast %29 : vector<1x96xf32> to vector<8x96xf32>
    %31 = arith.addf %28, %30 : vector<8x96xf32>
    %32 = vector.extract_strided_slice %31 {offsets = [0, 0], sizes = [8, 32], strides = [1, 1]} : vector<8x96xf32> to vector<8x32xf32>
    %33 = vector.extract_strided_slice %31 {offsets = [0, 32], sizes = [8, 32], strides = [1, 1]} : vector<8x96xf32> to vector<8x32xf32>
    %34 = vector.extract_strided_slice %31 {offsets = [0, 64], sizes = [8, 32], strides = [1, 1]} : vector<8x96xf32> to vector<8x32xf32>
    %35 = vector.extract_strided_slice %32 {offsets = [0, 0], sizes = [8, 8], strides = [1, 1]} : vector<8x32xf32> to vector<8x8xf32>
    %36 = vector.extract_strided_slice %32 {offsets = [0, 8], sizes = [8, 8], strides = [1, 1]} : vector<8x32xf32> to vector<8x8xf32>
    %37 = vector.extract_strided_slice %32 {offsets = [0, 16], sizes = [8, 8], strides = [1, 1]} : vector<8x32xf32> to vector<8x8xf32>
    %38 = vector.extract_strided_slice %32 {offsets = [0, 24], sizes = [8, 8], strides = [1, 1]} : vector<8x32xf32> to vector<8x8xf32>
    %39 = vector.shape_cast %35 : vector<8x8xf32> to vector<1x8x8xf32>
    %40 = vector.shape_cast %36 : vector<8x8xf32> to vector<1x8x8xf32>
    %41 = vector.shape_cast %37 : vector<8x8xf32> to vector<1x8x8xf32>
    %42 = vector.shape_cast %38 : vector<8x8xf32> to vector<1x8x8xf32>
    %43 = tpu.concatenate %39, %40, %41, %42 in 0 : vector<1x8x8xf32>, vector<1x8x8xf32>, vector<1x8x8xf32>, vector<1x8x8xf32> -> vector<4x8x8xf32>
    %44 = arith.truncf %43 : vector<4x8x8xf32> to vector<4x8x8xbf16>
    %45 = vector.extract_strided_slice %33 {offsets = [0, 0], sizes = [8, 8], strides = [1, 1]} : vector<8x32xf32> to vector<8x8xf32>
    %46 = vector.extract_strided_slice %33 {offsets = [0, 8], sizes = [8, 8], strides = [1, 1]} : vector<8x32xf32> to vector<8x8xf32>
    %47 = vector.extract_strided_slice %33 {offsets = [0, 16], sizes = [8, 8], strides = [1, 1]} : vector<8x32xf32> to vector<8x8xf32>
    %48 = vector.extract_strided_slice %33 {offsets = [0, 24], sizes = [8, 8], strides = [1, 1]} : vector<8x32xf32> to vector<8x8xf32>
    %49 = vector.shape_cast %45 : vector<8x8xf32> to vector<1x8x8xf32>
    %50 = vector.shape_cast %46 : vector<8x8xf32> to vector<1x8x8xf32>
    %51 = vector.shape_cast %47 : vector<8x8xf32> to vector<1x8x8xf32>
    %52 = vector.shape_cast %48 : vector<8x8xf32> to vector<1x8x8xf32>
    %53 = tpu.concatenate %49, %50, %51, %52 in 0 : vector<1x8x8xf32>, vector<1x8x8xf32>, vector<1x8x8xf32>, vector<1x8x8xf32> -> vector<4x8x8xf32>
    %54 = arith.truncf %53 : vector<4x8x8xf32> to vector<4x8x8xbf16>
    %55 = vector.extract_strided_slice %34 {offsets = [0, 0], sizes = [8, 8], strides = [1, 1]} : vector<8x32xf32> to vector<8x8xf32>
    %56 = vector.extract_strided_slice %34 {offsets = [0, 8], sizes = [8, 8], strides = [1, 1]} : vector<8x32xf32> to vector<8x8xf32>
    %57 = vector.extract_strided_slice %34 {offsets = [0, 16], sizes = [8, 8], strides = [1, 1]} : vector<8x32xf32> to vector<8x8xf32>
    %58 = vector.extract_strided_slice %34 {offsets = [0, 24], sizes = [8, 8], strides = [1, 1]} : vector<8x32xf32> to vector<8x8xf32>
    %59 = vector.shape_cast %55 : vector<8x8xf32> to vector<1x8x8xf32>
    %60 = vector.shape_cast %56 : vector<8x8xf32> to vector<1x8x8xf32>
    %61 = vector.shape_cast %57 : vector<8x8xf32> to vector<1x8x8xf32>
    %62 = vector.shape_cast %58 : vector<8x8xf32> to vector<1x8x8xf32>
    %63 = tpu.concatenate %59, %60, %61, %62 in 0 : vector<1x8x8xf32>, vector<1x8x8xf32>, vector<1x8x8xf32>, vector<1x8x8xf32> -> vector<4x8x8xf32>
    %64 = arith.truncf %63 : vector<4x8x8xf32> to vector<4x8x8xbf16>
    "tpu.trace_start"() <{level = 10 : i32, message = "hqd,hkd->hqk"}> : () -> ()
    %cst_15 = arith.constant dense<0.000000e+00> : vector<4x8x8xf32>
    %65 = tpu.matmul %44, %54, %cst_15 {dimension_numbers = #tpu.dot_dimension_numbers<[2], [2], [1], [1], [0, 0, 0, 1, 1, 1], [0], [0]>} : vector<4x8x8xbf16>, vector<4x8x8xbf16>, vector<4x8x8xf32> -> vector<4x8x8xf32>
    "tpu.trace_stop"() : () -> ()
    %cst_16 = arith.constant dense<0xFF800000> : vector<4x8xf32>
    %66 = vector.multi_reduction <maximumf>, %65, %cst_16 [2] : vector<4x8x8xf32> to vector<4x8xf32>
    %67 = vector.shape_cast %66 : vector<4x8xf32> to vector<4x8x1xf32>
    %68 = vector.broadcast %67 : vector<4x8x1xf32> to vector<4x8x8xf32>
    %69 = arith.subf %65, %68 : vector<4x8x8xf32>
    %70 = math.exp %69 : vector<4x8x8xf32>
    %cst_17 = arith.constant dense<0.000000e+00> : vector<4x8xf32>
    %71 = vector.multi_reduction <add>, %70, %cst_17 [2] : vector<4x8x8xf32> to vector<4x8xf32>
    %72 = vector.shape_cast %71 : vector<4x8xf32> to vector<4x8x1xf32>
    %73 = tpu.reciprocal %72 {approx = true} : vector<4x8x1xf32> -> vector<4x8x1xf32>
    %74 = vector.broadcast %73 : vector<4x8x1xf32> to vector<4x8x8xf32>
    %75 = arith.mulf %70, %74 : vector<4x8x8xf32>
    %76 = arith.truncf %75 : vector<4x8x8xf32> to vector<4x8x8xbf16>
    "tpu.trace_start"() <{level = 10 : i32, message = "hqk,hkd->hqd"}> : () -> ()
    %cst_18 = arith.constant dense<0.000000e+00> : vector<4x8x8xf32>
    %77 = tpu.matmul %76, %64, %cst_18 {dimension_numbers = #tpu.dot_dimension_numbers<[2], [1], [1], [2], [0, 0, 0, 1, 1, 2], [0], [0]>} : vector<4x8x8xbf16>, vector<4x8x8xbf16>, vector<4x8x8xf32> -> vector<4x8x8xf32>
    "tpu.trace_stop"() : () -> ()
    %78 = vector.extract_strided_slice %77 {offsets = [0, 0, 0], sizes = [1, 8, 8], strides = [1, 1, 1]} : vector<4x8x8xf32> to vector<1x8x8xf32>
    %79 = vector.shape_cast %78 : vector<1x8x8xf32> to vector<8x8xf32>
    %80 = vector.extract_strided_slice %77 {offsets = [1, 0, 0], sizes = [1, 8, 8], strides = [1, 1, 1]} : vector<4x8x8xf32> to vector<1x8x8xf32>
    %81 = vector.shape_cast %80 : vector<1x8x8xf32> to vector<8x8xf32>
    %82 = vector.extract_strided_slice %77 {offsets = [2, 0, 0], sizes = [1, 8, 8], strides = [1, 1, 1]} : vector<4x8x8xf32> to vector<1x8x8xf32>
    %83 = vector.shape_cast %82 : vector<1x8x8xf32> to vector<8x8xf32>
    %84 = vector.extract_strided_slice %77 {offsets = [3, 0, 0], sizes = [1, 8, 8], strides = [1, 1, 1]} : vector<4x8x8xf32> to vector<1x8x8xf32>
    %85 = vector.shape_cast %84 : vector<1x8x8xf32> to vector<8x8xf32>
    %86 = tpu.concatenate %79, %81, %83, %85 in 1 : vector<8x8xf32>, vector<8x8xf32>, vector<8x8xf32>, vector<8x8xf32> -> vector<8x32xf32>
    %87 = arith.truncf %86 : vector<8x32xf32> to vector<8x32xbf16>
    %c0_19 = arith.constant 0 : index
    %c0_20 = arith.constant 0 : index
    %88 = vector.load %arg6[%c0_19, %c0_20] : memref<32x32xbf16, #tpu.memory_space<vmem>>, vector<32x32xbf16>
    %cst_21 = arith.constant dense<0.000000e+00> : vector<8x32xf32>
    %89 = tpu.matmul %87, %88, %cst_21 {dimension_numbers = #tpu.dot_dimension_numbers<[1], [0], [0], [1], [0, 0, 1, 1], [], []>} : vector<8x32xbf16>, vector<32x32xbf16>, vector<8x32xf32> -> vector<8x32xf32>
    %c0_22 = arith.constant 0 : index
    %c0_23 = arith.constant 0 : index
    %90 = vector.load %arg7[%c0_22, %c0_23] : memref<1x32xf32, #tpu.memory_space<vmem>>, vector<1x32xf32>
    %91 = vector.broadcast %90 : vector<1x32xf32> to vector<8x32xf32>
    %92 = arith.addf %89, %91 : vector<8x32xf32>
    %93 = arith.addf %1, %92 : vector<8x32xf32>
    %c0_24 = arith.constant 0 : index
    %c0_25 = arith.constant 0 : index
    %94 = vector.load %arg8[%c0_24, %c0_25] : memref<1x32xf32, #tpu.memory_space<vmem>>, vector<1x32xf32>
    %c0_26 = arith.constant 0 : index
    %c0_27 = arith.constant 0 : index
    %95 = vector.load %arg9[%c0_26, %c0_27] : memref<1x32xf32, #tpu.memory_space<vmem>>, vector<1x32xf32>
    %cst_28 = arith.constant dense<0.000000e+00> : vector<8xf32>
    %96 = vector.multi_reduction <add>, %93, %cst_28 [1] : vector<8x32xf32> to vector<8xf32>
    %97 = vector.shape_cast %96 : vector<8xf32> to vector<8x1xf32>
    %cst_29 = arith.constant 3.200000e+01 : f32
    %98 = vector.broadcast %cst_29 : f32 to vector<8x1xf32>
    %99 = arith.divf %97, %98 : vector<8x1xf32>
    %100 = vector.broadcast %99 : vector<8x1xf32> to vector<8x32xf32>
    %101 = arith.subf %93, %100 : vector<8x32xf32>
    %102 = arith.mulf %101, %101 : vector<8x32xf32>
    %cst_30 = arith.constant dense<0.000000e+00> : vector<8xf32>
    %103 = vector.multi_reduction <add>, %102, %cst_30 [1] : vector<8x32xf32> to vector<8xf32>
    %104 = vector.shape_cast %103 : vector<8xf32> to vector<8x1xf32>
    %cst_31 = arith.constant 3.200000e+01 : f32
    %105 = vector.broadcast %cst_31 : f32 to vector<8x1xf32>
    %106 = arith.divf %104, %105 : vector<8x1xf32>
    %107 = vector.broadcast %99 : vector<8x1xf32> to vector<8x32xf32>
    %108 = arith.subf %93, %107 : vector<8x32xf32>
    %cst_32 = arith.constant 9.99999974E-6 : f32
    %109 = vector.broadcast %cst_32 : f32 to vector<8x1xf32>
    %110 = arith.addf %106, %109 : vector<8x1xf32>
    %111 = math.rsqrt %110 : vector<8x1xf32>
    %112 = vector.broadcast %111 : vector<8x1xf32> to vector<8x32xf32>
    %113 = arith.mulf %108, %112 : vector<8x32xf32>
    %114 = vector.broadcast %94 : vector<1x32xf32> to vector<8x32xf32>
    %115 = arith.mulf %113, %114 : vector<8x32xf32>
    %116 = vector.broadcast %95 : vector<1x32xf32> to vector<8x32xf32>
    %117 = arith.addf %115, %116 : vector<8x32xf32>
    %118 = arith.truncf %117 : vector<8x32xf32> to vector<8x32xbf16>
    %c0_33 = arith.constant 0 : index
    %c0_34 = arith.constant 0 : index
    %119 = vector.load %arg10[%c0_33, %c0_34] : memref<32x96xbf16, #tpu.memory_space<vmem>>, vector<32x96xbf16>
    %cst_35 = arith.constant dense<0.000000e+00> : vector<8x96xf32>
    %120 = tpu.matmul %118, %119, %cst_35 {dimension_numbers = #tpu.dot_dimension_numbers<[1], [0], [0], [1], [0, 0, 1, 1], [], []>} : vector<8x32xbf16>, vector<32x96xbf16>, vector<8x96xf32> -> vector<8x96xf32>
    %c0_36 = arith.constant 0 : index
    %c0_37 = arith.constant 0 : index
    %121 = vector.load %arg11[%c0_36, %c0_37] : memref<1x96xf32, #tpu.memory_space<vmem>>, vector<1x96xf32>
    %122 = vector.broadcast %121 : vector<1x96xf32> to vector<8x96xf32>
    %123 = arith.addf %120, %122 : vector<8x96xf32>
    %cst_38 = arith.constant 0.000000e+00 : f32
    %124 = vector.broadcast %cst_38 : f32 to vector<8x96xf32>
    %125 = arith.maximumf %123, %124 : vector<8x96xf32>
    %126 = arith.truncf %125 : vector<8x96xf32> to vector<8x96xbf16>
    %c0_39 = arith.constant 0 : index
    %c0_40 = arith.constant 0 : index
    %127 = vector.load %arg12[%c0_39, %c0_40] : memref<96x32xbf16, #tpu.memory_space<vmem>>, vector<96x32xbf16>
    %cst_41 = arith.constant dense<0.000000e+00> : vector<8x32xf32>
    %128 = tpu.matmul %126, %127, %cst_41 {dimension_numbers = #tpu.dot_dimension_numbers<[1], [0], [0], [1], [0, 0, 1, 1], [], []>} : vector<8x96xbf16>, vector<96x32xbf16>, vector<8x32xf32> -> vector<8x32xf32>
    %c0_42 = arith.constant 0 : index
    %c0_43 = arith.constant 0 : index
    %129 = vector.load %arg13[%c0_42, %c0_43] : memref<1x32xf32, #tpu.memory_space<vmem>>, vector<1x32xf32>
    %130 = vector.broadcast %129 : vector<1x32xf32> to vector<8x32xf32>
    %131 = arith.addf %128, %130 : vector<8x32xf32>
    %132 = arith.addf %93, %131 : vector<8x32xf32>
    %c0_44 = arith.constant 0 : index
    %c0_45 = arith.constant 0 : index
    %c0_46 = arith.constant 0 : index
    %133 = vector.load %arg14[%c0_44, %c0_45, %c0_46] : memref<1x8x32xf32, #tpu.memory_space<vmem>>, vector<1x8x32xf32>
    %134 = vector.shape_cast %133 : vector<1x8x32xf32> to vector<8x32xf32>
    %135 = vector.shape_cast %132 : vector<8x32xf32> to vector<1x8x32xf32>
    tpu.vector_store %arg14[%c0_44, %c0_45, %c0_46], %135 {strides = array<i32>} : memref<1x8x32xf32, #tpu.memory_space<vmem>>, vector<1x8x32xf32>,
    return
  }
  func.func @transform_0(%arg0: i32) -> (i32, i32, i32) {
    %c0_i32 = arith.constant 0 : i32
    %c0_i32_0 = arith.constant 0 : i32
    %c0_i32_1 = arith.constant 0 : i32
    return %arg0, %c0_i32, %c0_i32_0 : i32, i32, i32
  }
  func.func @transform_1(%arg0: i32) -> (i32, i32) {
    %c0_i32 = arith.constant 0 : i32
    %c0_i32_0 = arith.constant 0 : i32
    %c0_i32_1 = arith.constant 0 : i32
    return %c0_i32, %c0_i32_0 : i32, i32
  }
  func.func @transform_2(%arg0: i32) -> (i32, i32) {
    %c0_i32 = arith.constant 0 : i32
    %c0_i32_0 = arith.constant 0 : i32
    %c0_i32_1 = arith.constant 0 : i32
    return %c0_i32, %c0_i32_0 : i32, i32
  }
  func.func @transform_3(%arg0: i32) -> (i32, i32) {
    %c0_i32 = arith.constant 0 : i32
    %c0_i32_0 = arith.constant 0 : i32
    %c0_i32_1 = arith.constant 0 : i32
    return %c0_i32, %c0_i32_0 : i32, i32
  }
  func.func @transform_4(%arg0: i32) -> (i32, i32) {
    %c0_i32 = arith.constant 0 : i32
    %c0_i32_0 = arith.constant 0 : i32
    %c0_i32_1 = arith.constant 0 : i32
    return %c0_i32, %c0_i32_0 : i32, i32
  }
  func.func @transform_5(%arg0: i32) -> (i32, i32) {
    %c0_i32 = arith.constant 0 : i32
    %c0_i32_0 = arith.constant 0 : i32
    %c0_i32_1 = arith.constant 0 : i32
    return %c0_i32, %c0_i32_0 : i32, i32
  }
  func.func @transform_6(%arg0: i32) -> (i32, i32) {
    %c0_i32 = arith.constant 0 : i32
    %c0_i32_0 = arith.constant 0 : i32
    %c0_i32_1 = arith.constant 0 : i32
    return %c0_i32, %c0_i32_0 : i32, i32
  }
  func.func @transform_7(%arg0: i32) -> (i32, i32) {
    %c0_i32 = arith.constant 0 : i32
    %c0_i32_0 = arith.constant 0 : i32
    %c0_i32_1 = arith.constant 0 : i32
    return %c0_i32, %c0_i32_0 : i32, i32
  }
  func.func @transform_8(%arg0: i32) -> (i32, i32) {
    %c0_i32 = arith.constant 0 : i32
    %c0_i32_0 = arith.constant 0 : i32
    %c0_i32_1 = arith.constant 0 : i32
    return %c0_i32, %c0_i32_0 : i32, i32
  }
  func.func @transform_9(%arg0: i32) -> (i32, i32) {
    %c0_i32 = arith.constant 0 : i32
    %c0_i32_0 = arith.constant 0 : i32
    %c0_i32_1 = arith.constant 0 : i32
    return %c0_i32, %c0_i32_0 : i32, i32
  }
  func.func @transform_10(%arg0: i32) -> (i32, i32) {
    %c0_i32 = arith.constant 0 : i32
    %c0_i32_0 = arith.constant 0 : i32
    %c0_i32_1 = arith.constant 0 : i32
    return %c0_i32, %c0_i32_0 : i32, i32
  }
  func.func @transform_11(%arg0: i32) -> (i32, i32) {
    %c0_i32 = arith.constant 0 : i32
    %c0_i32_0 = arith.constant 0 : i32
    %c0_i32_1 = arith.constant 0 : i32
    return %c0_i32, %c0_i32_0 : i32, i32
  }
  func.func @transform_12(%arg0: i32) -> (i32, i32) {
    %c0_i32 = arith.constant 0 : i32
    %c0_i32_0 = arith.constant 0 : i32
    %c0_i32_1 = arith.constant 0 : i32
    return %c0_i32, %c0_i32_0 : i32, i32
  }
  func.func @transform_13(%arg0: i32) -> (i32, i32, i32) {
    %c0_i32 = arith.constant 0 : i32
    %c0_i32_0 = arith.constant 0 : i32
    %c0_i32_1 = arith.constant 0 : i32
    return %arg0, %c0_i32, %c0_i32_0 : i32, i32, i32
  }
}

</mosaic_0001>

<llo_original>
// kernel: tpu_custom_call.1
$region0: #{tpu_custom_call.1}
  #allocation0 [shape = 'u32[]', space=smem, size = 0x4, offset = 0x4, fixed_abs, tag = 'smem constant byte address 0x4 - core index']
  #allocation1 [shape = 'u32[144,128]{1,0:T(1,128)}', space=vmem, size = 0x12000, scoped, tag = 'internal scratch']
  %s0 = inlined_call_operand.hbm [shape: f32[2,8,32], index: 0, kind: input, shape index: {}]
  %s1 = inlined_call_operand.hbm [shape: f32[1,32], index: 1, kind: input, shape index: {}]
  %s2 = inlined_call_operand.hbm [shape: f32[1,32], index: 2, kind: input, shape index: {}]
  %s3 = inlined_call_operand.hbm [shape: bf16[32,96], index: 3, kind: input, shape index: {}]
  %s4 = inlined_call_operand.hbm [shape: f32[1,96], index: 4, kind: input, shape index: {}]
  %s5 = inlined_call_operand.hbm [shape: bf16[32,32], index: 5, kind: input, shape index: {}]
  %s6 = inlined_call_operand.hbm [shape: f32[1,32], index: 6, kind: input, shape index: {}]
  %s7 = inlined_call_operand.hbm [shape: f32[1,32], index: 7, kind: input, shape index: {}]
  %s8 = inlined_call_operand.hbm [shape: f32[1,32], index: 8, kind: input, shape index: {}]
  %s9 = inlined_call_operand.hbm [shape: bf16[32,96], index: 9, kind: input, shape index: {}]
  %s10 = inlined_call_operand.hbm [shape: f32[1,96], index: 10, kind: input, shape index: {}]
  %s11 = inlined_call_operand.hbm [shape: bf16[96,32], index: 11, kind: input, shape index: {}]
  %s12 = inlined_call_operand.hbm [shape: f32[1,32], index: 12, kind: input, shape index: {}]
  %s13 = inlined_call_operand.hbm [shape: f32[2,8,32], index: 13, kind: output, shape index: {}]
  %s14 = sld [smem:[#allocation0]]
  $region137: #{tpu_custom_call.1} parent=0
    _
  %s16 = ssub.s32 1, %s14
  %s17 = scalar_select 0, %s16, %s14
  $region1: #{tpu_custom_call.1} parent=0
    #allocation2 [shape = 'u8[8192]{0}', space=vmem, size = 0x2000, scoped, tag = 'input window, operand 0']
    #allocation3 [shape = 's32[2]{0}', space=sflag, size = 0x8, scoped, tag = 'scoped memory for tpu_custom_call.1']
    #allocation4 [shape = 's32[2]{0}', space=sflag, size = 0x8, scoped, tag = 'scoped memory for tpu_custom_call.1']
    #allocation5 [shape = 'u8[512]{0}', space=vmem, size = 0x400, scoped, tag = 'input window, operand 1, single buffered']
    #allocation6 [shape = 's32[1]{0}', space=sflag, size = 0x4, scoped, tag = 'scoped memory for tpu_custom_call.1']
    #allocation7 [shape = 'u8[512]{0}', space=vmem, size = 0x400, scoped, tag = 'input window, operand 2, single buffered']
    #allocation8 [shape = 'u8[8192]{0}', space=vmem, size = 0x2000, scoped, tag = 'input window, operand 3, single buffered']
    #allocation9 [shape = 's32[1]{0}', space=sflag, size = 0x4, scoped, tag = 'scoped memory for tpu_custom_call.1']
    #allocation10 [shape = 'u8[512]{0}', space=vmem, size = 0x400, scoped, tag = 'input window, operand 4, single buffered']
    #allocation11 [shape = 'u8[8192]{0}', space=vmem, size = 0x2000, scoped, tag = 'input window, operand 5, single buffered']
    #allocation12 [shape = 's32[1]{0}', space=sflag, size = 0x4, scoped, tag = 'scoped memory for tpu_custom_call.1']
    #allocation13 [shape = 'u8[512]{0}', space=vmem, size = 0x400, scoped, tag = 'input window, operand 6, single buffered']
    #allocation14 [shape = 'u8[512]{0}', space=vmem, size = 0x400, scoped, tag = 'input window, operand 7, single buffered']
    #allocation15 [shape = 's32[1]{0}', space=sflag, size = 0x4, scoped, tag = 'scoped memory for tpu_custom_call.1']
    #allocation16 [shape = 'u8[512]{0}', space=vmem, size = 0x400, scoped, tag = 'input window, operand 8, single buffered']
    #allocation17 [shape = 'u8[8192]{0}', space=vmem, size = 0x2000, scoped, tag = 'input window, operand 9, single buffered']
    #allocation18 [shape = 's32[1]{0}', space=sflag, size = 0x4, scoped, tag = 'scoped memory for tpu_custom_call.1']
    #allocation19 [shape = 'u8[512]{0}', space=vmem, size = 0x400, scoped, tag = 'input window, operand 10, single buffered']
    #allocation20 [shape = 'u8[24576]{0}', space=vmem, size = 0x6000, scoped, tag = 'input window, operand 11, single buffered']
    #allocation21 [shape = 's32[1]{0}', space=sflag, size = 0x4, scoped, tag = 'scoped memory for tpu_custom_call.1']
    #allocation22 [shape = 'u8[512]{0}', space=vmem, size = 0x400, scoped, tag = 'input window, operand 12, single buffered']
    #allocation23 [shape = 'u8[8192]{0}', space=vmem, size = 0x2000, scoped, tag = 'output window, operand 0']
    %18 = vsyncpa [#allocation3], 0
    %s19 = scalar_lea.sflag [#allocation3], 1
    %20 = vsyncpa %s19, 0
    %21 = vsyncpa [#allocation6], 0
    %22 = vsyncpa [#allocation9], 0
    %23 = vsyncpa [#allocation12], 0
    %24 = vsyncpa [#allocation15], 0
    %25 = vsyncpa [#allocation18], 0
    %26 = vsyncpa [#allocation21], 0
    %27 = vsyncpa [#allocation4], 0
    %s28 = scalar_lea.sflag [#allocation4], 1
    %29 = vsyncpa %s28, 0
    loop: start=0, step=1, limit=4
    $region2: #{tpu_custom_call.1} parent=1 // loop_pre_header
      _
    $region3: #{tpu_custom_call.1} parent=1 // loop_header
      %s31 = sphi 0, %s35
      %p32 = scmp.ge.s32.totalorder %s31, 4
      %s41 = sphi 0, %s43
      %s44 = sphi 0, %s41
      %s45 = sphi 0, %s44
      %s61 = sphi 0, %s45
      %s65 = sphi 0, %s65
      %s67 = sphi 0, %s65
      %s68 = sphi 0, %s67
      %s82 = sphi 0, %s68
      %s86 = sphi 0, %s86
      %s88 = sphi 0, %s86
      %s89 = sphi 0, %s88
      %s103 = sphi 0, %s89
      %s107 = sphi 0, %s107
      %s109 = sphi 0, %s107
      %s110 = sphi 0, %s109
      %s124 = sphi 0, %s110
      %s128 = sphi 0, %s128
      %s130 = sphi 0, %s128
      %s131 = sphi 0, %s130
      %s145 = sphi 0, %s131
      %s149 = sphi 0, %s149
      %s151 = sphi 0, %s149
      %s152 = sphi 0, %s151
      %s166 = sphi 0, %s152
      %s170 = sphi 0, %s170
      %s172 = sphi 0, %s170
      %s173 = sphi 0, %s172
      %s187 = sphi 0, %s173
      %s191 = sphi 0, %s191
      %s193 = sphi 0, %s191
      %s194 = sphi 0, %s193
      %s208 = sphi 0, %s194
      %s212 = sphi 0, %s212
      %s214 = sphi 0, %s212
      %s215 = sphi 0, %s214
      %s229 = sphi 0, %s215
      %s233 = sphi 0, %s233
      %s235 = sphi 0, %s233
      %s236 = sphi 0, %s235
      %s250 = sphi 0, %s236
      %s254 = sphi 0, %s254
      %s256 = sphi 0, %s254
      %s257 = sphi 0, %s256
      %s271 = sphi 0, %s257
      %s275 = sphi 0, %s275
      %s277 = sphi 0, %s275
      %s278 = sphi 0, %s277
      %s292 = sphi 0, %s278
      %s296 = sphi 0, %s296
      %s298 = sphi 0, %s296
      %s299 = sphi 0, %s298
      %s313 = sphi 0, %s299
      %s319 = sphi 0, %s321
      %s322 = sphi 0, %s319
      %s323 = sphi 0, %s322
      %s339 = sphi 0, %s323
    $region4: #{tpu_custom_call.1} parent=1 // loop_header_branch
      %34 = sbr.rel (%p32) target = $region8
    $region5: #{tpu_custom_call.1} parent=1 // loop_body
      %s36 = ssub.s32 %s31, 1
      %s37 = ssub.s32 %s31, 2
      %s38 = sadd.s32 %s31, 1
      %s39 = ssub.s32 %s31, %s38
      %p40 = scmp.eq.s32.totalorder %s39, 0
      %s42 = sadd.s32 %s41, 1
      %s43 = scalar_select %p40, %s41, %s42
      %p46 = pneg %p40
      %p47 = scmp.eq.s32.totalorder %s31, 1
      %p48 = por %p46, %p47
      %p49 = scmp.ne.s32.totalorder %s41, %s44
      %p50 = scmp.eq.s32.totalorder %s31, 0
      %p51 = por %p49, %p50
      %p52 = scmp.ne.s32.totalorder %s41, %s44
      %p53 = scmp.eq.s32.totalorder %s36, 1
      %p54 = por %p52, %p53
      %p55 = scmp.ne.s32.totalorder %s44, %s45
      %p56 = scmp.eq.s32.totalorder %s36, 0
      %p57 = por %p55, %p56
      %p58 = scmp.ne.s32.totalorder %s44, %s45
      %p59 = scmp.eq.s32.totalorder %s37, 1
      %p60 = por %p58, %p59
      %p62 = scmp.ne.s32.totalorder %s45, %s61
      %p63 = scmp.eq.s32.totalorder %s37, 0
      %p64 = por %p62, %p63
      %s66 = sadd.s32 %s65, 1
      %p69 = scmp.eq.s32.totalorder %s31, 1
      %p70 = scmp.ne.s32.totalorder %s65, %s67
      %p71 = scmp.eq.s32.totalorder %s31, 0
      %p72 = por %p70, %p71
      %p73 = scmp.ne.s32.totalorder %s65, %s67
      %p74 = scmp.eq.s32.totalorder %s36, 1
      %p75 = por %p73, %p74
      %p76 = scmp.ne.s32.totalorder %s67, %s68
      %p77 = scmp.eq.s32.totalorder %s36, 0
      %p78 = por %p76, %p77
      %p79 = scmp.ne.s32.totalorder %s67, %s68
      %p80 = scmp.eq.s32.totalorder %s37, 1
      %p81 = por %p79, %p80
      %p83 = scmp.ne.s32.totalorder %s68, %s82
      %p84 = scmp.eq.s32.totalorder %s37, 0
      %p85 = por %p83, %p84
      %s87 = sadd.s32 %s86, 1
      %p90 = scmp.eq.s32.totalorder %s31, 1
      %p91 = scmp.ne.s32.totalorder %s86, %s88
      %p92 = scmp.eq.s32.totalorder %s31, 0
      %p93 = por %p91, %p92
      %p94 = scmp.ne.s32.totalorder %s86, %s88
      %p95 = scmp.eq.s32.totalorder %s36, 1
      %p96 = por %p94, %p95
      %p97 = scmp.ne.s32.totalorder %s88, %s89
      %p98 = scmp.eq.s32.totalorder %s36, 0
      %p99 = por %p97, %p98
      %p100 = scmp.ne.s32.totalorder %s88, %s89
      %p101 = scmp.eq.s32.totalorder %s37, 1
      %p102 = por %p100, %p101
      %p104 = scmp.ne.s32.totalorder %s89, %s103
      %p105 = scmp.eq.s32.totalorder %s37, 0
      %p106 = por %p104, %p105
      %s108 = sadd.s32 %s107, 1
      %p111 = scmp.eq.s32.totalorder %s31, 1
      %p112 = scmp.ne.s32.totalorder %s107, %s109
      %p113 = scmp.eq.s32.totalorder %s31, 0
      %p114 = por %p112, %p113
      %p115 = scmp.ne.s32.totalorder %s107, %s109
      %p116 = scmp.eq.s32.totalorder %s36, 1
      %p117 = por %p115, %p116
      %p118 = scmp.ne.s32.totalorder %s109, %s110
      %p119 = scmp.eq.s32.totalorder %s36, 0
      %p120 = por %p118, %p119
      %p121 = scmp.ne.s32.totalorder %s109, %s110
      %p122 = scmp.eq.s32.totalorder %s37, 1
      %p123 = por %p121, %p122
      %p125 = scmp.ne.s32.totalorder %s110, %s124
      %p126 = scmp.eq.s32.totalorder %s37, 0
      %p127 = por %p125, %p126
      %s129 = sadd.s32 %s128, 1
      %p132 = scmp.eq.s32.totalorder %s31, 1
      %p133 = scmp.ne.s32.totalorder %s128, %s130
      %p134 = scmp.eq.s32.totalorder %s31, 0
      %p135 = por %p133, %p134
      %p136 = scmp.ne.s32.totalorder %s128, %s130
      %p137 = scmp.eq.s32.totalorder %s36, 1
      %p138 = por %p136, %p137
      %p139 = scmp.ne.s32.totalorder %s130, %s131
      %p140 = scmp.eq.s32.totalorder %s36, 0
      %p141 = por %p139, %p140
      %p142 = scmp.ne.s32.totalorder %s130, %s131
      %p143 = scmp.eq.s32.totalorder %s37, 1
      %p144 = por %p142, %p143
      %p146 = scmp.ne.s32.totalorder %s131, %s145
      %p147 = scmp.eq.s32.totalorder %s37, 0
      %p148 = por %p146, %p147
      %s150 = sadd.s32 %s149, 1
      %p153 = scmp.eq.s32.totalorder %s31, 1
      %p154 = scmp.ne.s32.totalorder %s149, %s151
      %p155 = scmp.eq.s32.totalorder %s31, 0
      %p156 = por %p154, %p155
      %p157 = scmp.ne.s32.totalorder %s149, %s151
      %p158 = scmp.eq.s32.totalorder %s36, 1
      %p159 = por %p157, %p158
      %p160 = scmp.ne.s32.totalorder %s151, %s152
      %p161 = scmp.eq.s32.totalorder %s36, 0
      %p162 = por %p160, %p161
      %p163 = scmp.ne.s32.totalorder %s151, %s152
      %p164 = scmp.eq.s32.totalorder %s37, 1
      %p165 = por %p163, %p164
      %p167 = scmp.ne.s32.totalorder %s152, %s166
      %p168 = scmp.eq.s32.totalorder %s37, 0
      %p169 = por %p167, %p168
      %s171 = sadd.s32 %s170, 1
      %p174 = scmp.eq.s32.totalorder %s31, 1
      %p175 = scmp.ne.s32.totalorder %s170, %s172
      %p176 = scmp.eq.s32.totalorder %s31, 0
      %p177 = por %p175, %p176
      %p178 = scmp.ne.s32.totalorder %s170, %s172
      %p179 = scmp.eq.s32.totalorder %s36, 1
      %p180 = por %p178, %p179
      %p181 = scmp.ne.s32.totalorder %s172, %s173
      %p182 = scmp.eq.s32.totalorder %s36, 0
      %p183 = por %p181, %p182
      %p184 = scmp.ne.s32.totalorder %s172, %s173
      %p185 = scmp.eq.s32.totalorder %s37, 1
      %p186 = por %p184, %p185
      %p188 = scmp.ne.s32.totalorder %s173, %s187
      %p189 = scmp.eq.s32.totalorder %s37, 0
      %p190 = por %p188, %p189
      %s192 = sadd.s32 %s191, 1
      %p195 = scmp.eq.s32.totalorder %s31, 1
      %p196 = scmp.ne.s32.totalorder %s191, %s193
      %p197 = scmp.eq.s32.totalorder %s31, 0
      %p198 = por %p196, %p197
      %p199 = scmp.ne.s32.totalorder %s191, %s193
      %p200 = scmp.eq.s32.totalorder %s36, 1
      %p201 = por %p199, %p200
      %p202 = scmp.ne.s32.totalorder %s193, %s194
      %p203 = scmp.eq.s32.totalorder %s36, 0
      %p204 = por %p202, %p203
      %p205 = scmp.ne.s32.totalorder %s193, %s194
      %p206 = scmp.eq.s32.totalorder %s37, 1
      %p207 = por %p205, %p206
      %p209 = scmp.ne.s32.totalorder %s194, %s208
      %p210 = scmp.eq.s32.totalorder %s37, 0
      %p211 = por %p209, %p210
      %s213 = sadd.s32 %s212, 1
      %p216 = scmp.eq.s32.totalorder %s31, 1
      %p217 = scmp.ne.s32.totalorder %s212, %s214
      %p218 = scmp.eq.s32.totalorder %s31, 0
      %p219 = por %p217, %p218
      %p220 = scmp.ne.s32.totalorder %s212, %s214
      %p221 = scmp.eq.s32.totalorder %s36, 1
      %p222 = por %p220, %p221
      %p223 = scmp.ne.s32.totalorder %s214, %s215
      %p224 = scmp.eq.s32.totalorder %s36, 0
      %p225 = por %p223, %p224
      %p226 = scmp.ne.s32.totalorder %s214, %s215
      %p227 = scmp.eq.s32.totalorder %s37, 1
      %p228 = por %p226, %p227
      %p230 = scmp.ne.s32.totalorder %s215, %s229
      %p231 = scmp.eq.s32.totalorder %s37, 0
      %p232 = por %p230, %p231
      %s234 = sadd.s32 %s233, 1
      %p237 = scmp.eq.s32.totalorder %s31, 1
      %p238 = scmp.ne.s32.totalorder %s233, %s235
      %p239 = scmp.eq.s32.totalorder %s31, 0
      %p240 = por %p238, %p239
      %p241 = scmp.ne.s32.totalorder %s233, %s235
      %p242 = scmp.eq.s32.totalorder %s36, 1
      %p243 = por %p241, %p242
      %p244 = scmp.ne.s32.totalorder %s235, %s236
      %p245 = scmp.eq.s32.totalorder %s36, 0
      %p246 = por %p244, %p245
      %p247 = scmp.ne.s32.totalorder %s235, %s236
      %p248 = scmp.eq.s32.totalorder %s37, 1
      %p249 = por %p247, %p248
      %p251 = scmp.ne.s32.totalorder %s236, %s250
      %p252 = scmp.eq.s32.totalorder %s37, 0
      %p253 = por %p251, %p252
      %s255 = sadd.s32 %s254, 1
      %p258 = scmp.eq.s32.totalorder %s31, 1
      %p259 = scmp.ne.s32.totalorder %s254, %s256
      %p260 = scmp.eq.s32.totalorder %s31, 0
      %p261 = por %p259, %p260
      %p262 = scmp.ne.s32.totalorder %s254, %s256
      %p263 = scmp.eq.s32.totalorder %s36, 1
      %p264 = por %p262, %p263
      %p265 = scmp.ne.s32.totalorder %s256, %s257
      %p266 = scmp.eq.s32.totalorder %s36, 0
      %p267 = por %p265, %p266
      %p268 = scmp.ne.s32.totalorder %s256, %s257
      %p269 = scmp.eq.s32.totalorder %s37, 1
      %p270 = por %p268, %p269
      %p272 = scmp.ne.s32.totalorder %s257, %s271
      %p273 = scmp.eq.s32.totalorder %s37, 0
      %p274 = por %p272, %p273
      %s276 = sadd.s32 %s275, 1
      %p279 = scmp.eq.s32.totalorder %s31, 1
      %p280 = scmp.ne.s32.totalorder %s275, %s277
      %p281 = scmp.eq.s32.totalorder %s31, 0
      %p282 = por %p280, %p281
      %p283 = scmp.ne.s32.totalorder %s275, %s277
      %p284 = scmp.eq.s32.totalorder %s36, 1
      %p285 = por %p283, %p284
      %p286 = scmp.ne.s32.totalorder %s277, %s278
      %p287 = scmp.eq.s32.totalorder %s36, 0
      %p288 = por %p286, %p287
      %p289 = scmp.ne.s32.totalorder %s277, %s278
      %p290 = scmp.eq.s32.totalorder %s37, 1
      %p291 = por %p289, %p290
      %p293 = scmp.ne.s32.totalorder %s278, %s292
      %p294 = scmp.eq.s32.totalorder %s37, 0
      %p295 = por %p293, %p294
      %s297 = sadd.s32 %s296, 1
      %p300 = scmp.eq.s32.totalorder %s31, 1
      %p301 = scmp.ne.s32.totalorder %s296, %s298
      %p302 = scmp.eq.s32.totalorder %s31, 0
      %p303 = por %p301, %p302
      %p304 = scmp.ne.s32.totalorder %s296, %s298
      %p305 = scmp.eq.s32.totalorder %s36, 1
      %p306 = por %p304, %p305
      %p307 = scmp.ne.s32.totalorder %s298, %s299
      %p308 = scmp.eq.s32.totalorder %s36, 0
      %p309 = por %p307, %p308
      %p310 = scmp.ne.s32.totalorder %s298, %s299
      %p311 = scmp.eq.s32.totalorder %s37, 1
      %p312 = por %p310, %p311
      %p314 = scmp.ne.s32.totalorder %s299, %s313
      %p315 = scmp.eq.s32.totalorder %s37, 0
      %p316 = por %p314, %p315
      %s317 = ssub.s32 %s31, %s38
      %p318 = scmp.eq.s32.totalorder %s317, 0
      %s320 = sadd.s32 %s319, 1
      %s321 = scalar_select %p318, %s319, %s320
      %p324 = pneg %p318
      %p325 = scmp.eq.s32.totalorder %s31, 1
      %p326 = por %p324, %p325
      %p327 = scmp.ne.s32.totalorder %s319, %s322
      %p328 = scmp.eq.s32.totalorder %s31, 0
      %p329 = por %p327, %p328
      %p330 = scmp.ne.s32.totalorder %s319, %s322
      %p331 = scmp.eq.s32.totalorder %s36, 1
      %p332 = por %p330, %p331
      %p333 = scmp.ne.s32.totalorder %s322, %s323
      %p334 = scmp.eq.s32.totalorder %s36, 0
      %p335 = por %p333, %p334
      %p336 = scmp.ne.s32.totalorder %s322, %s323
      %p337 = scmp.eq.s32.totalorder %s37, 1
      %p338 = por %p336, %p337
      %p340 = scmp.ne.s32.totalorder %s323, %s339
      %p341 = scmp.eq.s32.totalorder %s37, 0
      %p342 = por %p340, %p341
      %p343 = scmp.le.s32.totalorder 1, %s31
      %p344 = scmp.lt.s32.totalorder %s31, 3
      %p345 = pnand %p343, %p344
      %p346 = pneg %p345
      // Predicated region
      $region9: #{tpu_custom_call.1} parent=5 // pred_check
        _
      $region10: #{tpu_custom_call.1} parent=5 // pred_check_branch
        %348 = sbr.rel (%p345) target = $region12
      $region11: #{tpu_custom_call.1} parent=5 // pred_region
        %s349 = ssub.s32 %s31, 1
        // Predicated region
        $region13: #{tpu_custom_call.1} parent=11 // pred_check
          %p350 = pneg %p78
        $region14: #{tpu_custom_call.1} parent=11 // pred_check_branch
          %352 = sbr.rel (%p350) target = $region16
        $region15: #{tpu_custom_call.1} parent=11 // pred_region
          %s354 = ssub.s32 16, 16
          %355 = vsyncadd [#allocation6], %s354
          %s357 = sshll.u32 [#allocation5], 4
          %s358 = int_to_ptr.vmem [resolvable:$true] %s357
          %360 = dma.hbm_to_vmem [thread:$0]  %s1, 16, %s358, [#allocation6]
        $region16: #{tpu_custom_call.1} parent=11 // pred_fallthru
          _
        // Predicated region
        $region17: #{tpu_custom_call.1} parent=11 // pred_check
          %p361 = pneg %p99
        $region18: #{tpu_custom_call.1} parent=11 // pred_check_branch
          %363 = sbr.rel (%p361) target = $region20
        $region19: #{tpu_custom_call.1} parent=11 // pred_region
          %s365 = ssub.s32 16, 16
          %366 = vsyncadd [#allocation6], %s365
          %s368 = sshll.u32 [#allocation7], 4
          %s369 = int_to_ptr.vmem [resolvable:$true] %s368
          %371 = dma.hbm_to_vmem [thread:$0]  %s2, 16, %s369, [#allocation6]
        $region20: #{tpu_custom_call.1} parent=11 // pred_fallthru
          _
        // Predicated region
        $region21: #{tpu_custom_call.1} parent=11 // pred_check
          %p372 = pneg %p120
        $region22: #{tpu_custom_call.1} parent=11 // pred_check_branch
          %374 = sbr.rel (%p372) target = $region24
        $region23: #{tpu_custom_call.1} parent=11 // pred_region
          %s376 = ssub.s32 256, 256
          %377 = vsyncadd [#allocation9], %s376
          %s378 = sshll.u32 [#allocation8], 4
          %s379 = int_to_ptr.vmem [resolvable:$true] %s378
          %384 = dma.hbm_to_vmem [thread:$0]  %s3, 256, %s379, [#allocation9], 64, 64, 4
        $region24: #{tpu_custom_call.1} parent=11 // pred_fallthru
          _
        // Predicated region
        $region25: #{tpu_custom_call.1} parent=11 // pred_check
          %p385 = pneg %p141
        $region26: #{tpu_custom_call.1} parent=11 // pred_check_branch
          %387 = sbr.rel (%p385) target = $region28
        $region27: #{tpu_custom_call.1} parent=11 // pred_region
          %s389 = ssub.s32 16, 16
          %390 = vsyncadd [#allocation9], %s389
          %s392 = sshll.u32 [#allocation10], 4
          %s393 = int_to_ptr.vmem [resolvable:$true] %s392
          %395 = dma.hbm_to_vmem [thread:$0]  %s4, 16, %s393, [#allocation9]
        $region28: #{tpu_custom_call.1} parent=11 // pred_fallthru
          _
        // Predicated region
        $region29: #{tpu_custom_call.1} parent=11 // pred_check
          %p396 = pneg %p162
        $region30: #{tpu_custom_call.1} parent=11 // pred_check_branch
          %398 = sbr.rel (%p396) target = $region32
        $region31: #{tpu_custom_call.1} parent=11 // pred_region
          %s400 = ssub.s32 256, 256
          %401 = vsyncadd [#allocation12], %s400
          %s402 = sshll.u32 [#allocation11], 4
          %s403 = int_to_ptr.vmem [resolvable:$true] %s402
          %408 = dma.hbm_to_vmem [thread:$0]  %s5, 256, %s403, [#allocation12], 64, 64, 4
        $region32: #{tpu_custom_call.1} parent=11 // pred_fallthru
          _
        // Predicated region
        $region33: #{tpu_custom_call.1} parent=11 // pred_check
          %p409 = pneg %p183
        $region34: #{tpu_custom_call.1} parent=11 // pred_check_branch
          %411 = sbr.rel (%p409) target = $region36
        $region35: #{tpu_custom_call.1} parent=11 // pred_region
          %s413 = ssub.s32 16, 16
          %414 = vsyncadd [#allocation12], %s413
          %s416 = sshll.u32 [#allocation13], 4
          %s417 = int_to_ptr.vmem [resolvable:$true] %s416
          %419 = dma.hbm_to_vmem [thread:$0]  %s6, 16, %s417, [#allocation12]
        $region36: #{tpu_custom_call.1} parent=11 // pred_fallthru
          _
        // Predicated region
        $region37: #{tpu_custom_call.1} parent=11 // pred_check
          %p420 = pneg %p204
        $region38: #{tpu_custom_call.1} parent=11 // pred_check_branch
          %422 = sbr.rel (%p420) target = $region40
        $region39: #{tpu_custom_call.1} parent=11 // pred_region
          %s424 = ssub.s32 16, 16
          %425 = vsyncadd [#allocation15], %s424
          %s427 = sshll.u32 [#allocation14], 4
          %s428 = int_to_ptr.vmem [resolvable:$true] %s427
          %430 = dma.hbm_to_vmem [thread:$0]  %s7, 16, %s428, [#allocation15]
        $region40: #{tpu_custom_call.1} parent=11 // pred_fallthru
          _
        // Predicated region
        $region41: #{tpu_custom_call.1} parent=11 // pred_check
          %p431 = pneg %p225
        $region42: #{tpu_custom_call.1} parent=11 // pred_check_branch
          %433 = sbr.rel (%p431) target = $region44
        $region43: #{tpu_custom_call.1} parent=11 // pred_region
          %s435 = ssub.s32 16, 16
          %436 = vsyncadd [#allocation15], %s435
          %s438 = sshll.u32 [#allocation16], 4
          %s439 = int_to_ptr.vmem [resolvable:$true] %s438
          %441 = dma.hbm_to_vmem [thread:$0]  %s8, 16, %s439, [#allocation15]
        $region44: #{tpu_custom_call.1} parent=11 // pred_fallthru
          _
        // Predicated region
        $region45: #{tpu_custom_call.1} parent=11 // pred_check
          %p442 = pneg %p246
        $region46: #{tpu_custom_call.1} parent=11 // pred_check_branch
          %444 = sbr.rel (%p442) target = $region48
        $region47: #{tpu_custom_call.1} parent=11 // pred_region
          %s446 = ssub.s32 256, 256
          %447 = vsyncadd [#allocation18], %s446
          %s448 = sshll.u32 [#allocation17], 4
          %s449 = int_to_ptr.vmem [resolvable:$true] %s448
          %454 = dma.hbm_to_vmem [thread:$0]  %s9, 256, %s449, [#allocation18], 64, 64, 4
        $region48: #{tpu_custom_call.1} parent=11 // pred_fallthru
          _
        // Predicated region
        $region49: #{tpu_custom_call.1} parent=11 // pred_check
          %p455 = pneg %p267
        $region50: #{tpu_custom_call.1} parent=11 // pred_check_branch
          %457 = sbr.rel (%p455) target = $region52
        $region51: #{tpu_custom_call.1} parent=11 // pred_region
          %s459 = ssub.s32 16, 16
          %460 = vsyncadd [#allocation18], %s459
          %s462 = sshll.u32 [#allocation19], 4
          %s463 = int_to_ptr.vmem [resolvable:$true] %s462
          %465 = dma.hbm_to_vmem [thread:$0]  %s10, 16, %s463, [#allocation18]
        $region52: #{tpu_custom_call.1} parent=11 // pred_fallthru
          _
        // Predicated region
        $region53: #{tpu_custom_call.1} parent=11 // pred_check
          %p466 = pneg %p288
        $region54: #{tpu_custom_call.1} parent=11 // pred_check_branch
          %468 = sbr.rel (%p466) target = $region56
        $region55: #{tpu_custom_call.1} parent=11 // pred_region
          %s470 = ssub.s32 768, 768
          %471 = vsyncadd [#allocation21], %s470
          %s472 = sshll.u32 [#allocation20], 4
          %s473 = int_to_ptr.vmem [resolvable:$true] %s472
          %478 = dma.hbm_to_vmem [thread:$0]  %s11, 768, %s473, [#allocation21], 64, 64, 4
        $region56: #{tpu_custom_call.1} parent=11 // pred_fallthru
          _
        // Predicated region
        $region57: #{tpu_custom_call.1} parent=11 // pred_check
          %p479 = pneg %p309
        $region58: #{tpu_custom_call.1} parent=11 // pred_check_branch
          %481 = sbr.rel (%p479) target = $region60
        $region59: #{tpu_custom_call.1} parent=11 // pred_region
          %s483 = ssub.s32 16, 16
          %484 = vsyncadd [#allocation21], %s483
          %s486 = sshll.u32 [#allocation22], 4
          %s487 = int_to_ptr.vmem [resolvable:$true] %s486
          %489 = dma.hbm_to_vmem [thread:$0]  %s12, 16, %s487, [#allocation21]
        $region60: #{tpu_custom_call.1} parent=11 // pred_fallthru
          _
      $region12: #{tpu_custom_call.1} parent=5 // pred_fallthru
        _
      %p490 = scmp.lt.s32.totalorder %s31, 2
      // Predicated region
      $region61: #{tpu_custom_call.1} parent=5 // pred_check
        %p491 = pneg %p490
      $region62: #{tpu_custom_call.1} parent=5 // pred_check_branch
        %493 = sbr.rel (%p491) target = $region64
      $region63: #{tpu_custom_call.1} parent=5 // pred_region
        // Predicated region
        $region65: #{tpu_custom_call.1} parent=63 // pred_check
          %p494 = pneg %p51
        $region66: #{tpu_custom_call.1} parent=63 // pred_check_branch
          %496 = sbr.rel (%p494) target = $region68
        $region67: #{tpu_custom_call.1} parent=63 // pred_region
          %s497 = sand.u32 %s41, 1
          %s498 = scalar_lea.sflag [#allocation3], %s497
          %s499 = sand.u32 %s41, 1
          %s500 = smul.addr %s499, 8
          %s501 = scalar_lea.vmem [#allocation2], %s500
          %s503 = ssub.s32 128, 128
          %504 = vsyncadd %s498, %s503
          %s505 = smul.addr %s31, 128
          %s506 = scalar_lea.hbm %s0, %s505
          %s508 = sshll.u32 %s501, 4
          %s509 = int_to_ptr.vmem [resolvable:$true] %s508
          %511 = dma.hbm_to_vmem [thread:$0]  %s506, 128, %s509, %s498
        $region68: #{tpu_custom_call.1} parent=63 // pred_fallthru
          _
      $region64: #{tpu_custom_call.1} parent=5 // pred_fallthru
        _
      %p512 = scmp.le.s32.totalorder 1, %s31
      %p513 = scmp.lt.s32.totalorder %s31, 3
      %p514 = pnand %p512, %p513
      %p515 = pneg %p514
      // Predicated region
      $region69: #{tpu_custom_call.1} parent=5 // pred_check
        _
      $region70: #{tpu_custom_call.1} parent=5 // pred_check_branch
        %517 = sbr.rel (%p514) target = $region72
      $region71: #{tpu_custom_call.1} parent=5 // pred_region
        %s518 = ssub.s32 %s31, 1
        %s519 = sand.u32 %s44, 1
        %s520 = scalar_lea.sflag [#allocation3], %s519
        %s521 = sand.u32 %s44, 1
        %s522 = smul.addr %s521, 8
        %s523 = scalar_lea.vmem [#allocation2], %s522
        // Predicated region
        $region73: #{tpu_custom_call.1} parent=71 // pred_check
          %p524 = pneg %p57
        $region74: #{tpu_custom_call.1} parent=71 // pred_check_branch
          %526 = sbr.rel (%p524) target = $region76
        $region75: #{tpu_custom_call.1} parent=71 // pred_region
          %527 = dma.done %s520, 128
        $region76: #{tpu_custom_call.1} parent=71 // pred_fallthru
          _
        // Predicated region
        $region77: #{tpu_custom_call.1} parent=71 // pred_check
          %p528 = pneg %p78
        $region78: #{tpu_custom_call.1} parent=71 // pred_check_branch
          %530 = sbr.rel (%p528) target = $region80
        $region79: #{tpu_custom_call.1} parent=71 // pred_region
          %531 = dma.done [#allocation6], 16
        $region80: #{tpu_custom_call.1} parent=71 // pred_fallthru
          _
        // Predicated region
        $region81: #{tpu_custom_call.1} parent=71 // pred_check
          %p532 = pneg %p99
        $region82: #{tpu_custom_call.1} parent=71 // pred_check_branch
          %534 = sbr.rel (%p532) target = $region84
        $region83: #{tpu_custom_call.1} parent=71 // pred_region
          %535 = dma.done [#allocation6], 16
        $region84: #{tpu_custom_call.1} parent=71 // pred_fallthru
          _
        // Predicated region
        $region85: #{tpu_custom_call.1} parent=71 // pred_check
          %p536 = pneg %p120
        $region86: #{tpu_custom_call.1} parent=71 // pred_check_branch
          %538 = sbr.rel (%p536) target = $region88
        $region87: #{tpu_custom_call.1} parent=71 // pred_region
          %539 = dma.done [#allocation9], 256
        $region88: #{tpu_custom_call.1} parent=71 // pred_fallthru
          _
        // Predicated region
        $region89: #{tpu_custom_call.1} parent=71 // pred_check
          %p540 = pneg %p141
        $region90: #{tpu_custom_call.1} parent=71 // pred_check_branch
          %542 = sbr.rel (%p540) target = $region92
        $region91: #{tpu_custom_call.1} parent=71 // pred_region
          %543 = dma.done [#allocation9], 16
        $region92: #{tpu_custom_call.1} parent=71 // pred_fallthru
          _
        // Predicated region
        $region93: #{tpu_custom_call.1} parent=71 // pred_check
          %p544 = pneg %p162
        $region94: #{tpu_custom_call.1} parent=71 // pred_check_branch
          %546 = sbr.rel (%p544) target = $region96
        $region95: #{tpu_custom_call.1} parent=71 // pred_region
          %547 = dma.done [#allocation12], 256
        $region96: #{tpu_custom_call.1} parent=71 // pred_fallthru
          _
        // Predicated region
        $region97: #{tpu_custom_call.1} parent=71 // pred_check
          %p548 = pneg %p183
        $region98: #{tpu_custom_call.1} parent=71 // pred_check_branch
          %550 = sbr.rel (%p548) target = $region100
        $region99: #{tpu_custom_call.1} parent=71 // pred_region
          %551 = dma.done [#allocation12], 16
        $region100: #{tpu_custom_call.1} parent=71 // pred_fallthru
          _
        // Predicated region
        $region101: #{tpu_custom_call.1} parent=71 // pred_check
          %p552 = pneg %p204
        $region102: #{tpu_custom_call.1} parent=71 // pred_check_branch
          %554 = sbr.rel (%p552) target = $region104
        $region103: #{tpu_custom_call.1} parent=71 // pred_region
          %555 = dma.done [#allocation15], 16
        $region104: #{tpu_custom_call.1} parent=71 // pred_fallthru
          _
        // Predicated region
        $region105: #{tpu_custom_call.1} parent=71 // pred_check
          %p556 = pneg %p225
        $region106: #{tpu_custom_call.1} parent=71 // pred_check_branch
          %558 = sbr.rel (%p556) target = $region108
        $region107: #{tpu_custom_call.1} parent=71 // pred_region
          %559 = dma.done [#allocation15], 16
        $region108: #{tpu_custom_call.1} parent=71 // pred_fallthru
          _
        // Predicated region
        $region109: #{tpu_custom_call.1} parent=71 // pred_check
          %p560 = pneg %p246
        $region110: #{tpu_custom_call.1} parent=71 // pred_check_branch
          %562 = sbr.rel (%p560) target = $region112
        $region111: #{tpu_custom_call.1} parent=71 // pred_region
          %563 = dma.done [#allocation18], 256
        $region112: #{tpu_custom_call.1} parent=71 // pred_fallthru
          _
        // Predicated region
        $region113: #{tpu_custom_call.1} parent=71 // pred_check
          %p564 = pneg %p267
        $region114: #{tpu_custom_call.1} parent=71 // pred_check_branch
          %566 = sbr.rel (%p564) target = $region116
        $region115: #{tpu_custom_call.1} parent=71 // pred_region
          %567 = dma.done [#allocation18], 16
        $region116: #{tpu_custom_call.1} parent=71 // pred_fallthru
          _
        // Predicated region
        $region117: #{tpu_custom_call.1} parent=71 // pred_check
          %p568 = pneg %p288
        $region118: #{tpu_custom_call.1} parent=71 // pred_check_branch
          %570 = sbr.rel (%p568) target = $region120
        $region119: #{tpu_custom_call.1} parent=71 // pred_region
          %571 = dma.done [#allocation21], 768
        $region120: #{tpu_custom_call.1} parent=71 // pred_fallthru
          _
        // Predicated region
        $region121: #{tpu_custom_call.1} parent=71 // pred_check
          %p572 = pneg %p309
        $region122: #{tpu_custom_call.1} parent=71 // pred_check_branch
          %574 = sbr.rel (%p572) target = $region124
        $region123: #{tpu_custom_call.1} parent=71 // pred_region
          %575 = dma.done [#allocation21], 16
        $region124: #{tpu_custom_call.1} parent=71 // pred_fallthru
          _
        %s576 = sand.u32 %s44, 1
        %s577 = scalar_lea.sflag [#allocation3], %s576
        %s578 = sand.u32 %s44, 1
        %s579 = smul.addr %s578, 8
        %s580 = scalar_lea.vmem [#allocation2], %s579
        %p581 = pneg %p57
        %p582 = pneg %p54
        %p583 = pneg %p78
        %p584 = pneg %p75
        %p585 = pneg %p99
        %p586 = pneg %p96
        %p587 = pneg %p120
        %p588 = pneg %p117
        %p589 = pneg %p141
        %p590 = pneg %p138
        %p591 = pneg %p162
        %p592 = pneg %p159
        %p593 = pneg %p183
        %p594 = pneg %p180
        %p595 = pneg %p204
        %p596 = pneg %p201
        %p597 = pneg %p225
        %p598 = pneg %p222
        %p599 = pneg %p246
        %p600 = pneg %p243
        %p601 = pneg %p267
        %p602 = pneg %p264
        %p603 = pneg %p288
        %p604 = pneg %p285
        %p605 = pneg %p309
        %p606 = pneg %p306
        %p607 = pneg %p335
        %p608 = pneg %p332
        %s609 = sand.u32 %s322, 1
        %s610 = scalar_lea.sflag [#allocation4], %s609
        %s611 = sand.u32 %s322, 1
        %s612 = smul.addr %s611, 8
        %s613 = scalar_lea.vmem [#allocation23], %s612
        %v615 = vld [vmem:[%s523] sm:$0xff]
        %v616 = vld [vmem:[#allocation5] sm:$0x1]
        %v617 = vld [vmem:[#allocation7] sm:$0x1]
        %vm618 = vcmask 261120
        %v619 = vsel %vm618, %v615, 0.0
        %620 = vadd.xlane.f32.xlu0 %v619
        %v621 = vpop.xlane.xlu0 %620
        %v622 = vrcp.pop 32.0
        %v623 = vmul.f32 %v621, %v622
        %v624 = vsub.f32 %v615, %v623
        %v625 = vmul.f32 %v624, %v624
        %v626 = vsel %vm618, %v625, 0.0
        %627 = vadd.xlane.f32.xlu0 %v626
        %v628 = vpop.xlane.xlu0 %627
        %v629 = vmul.f32 %v628, %v622
        %v630 = vadd.f32 %v629, 1e-05
        %v631 = vrsqrt.pop %v630
        %v632 = vmul.f32 %v624, %v631
        %v634 = vlaneseq
        %v635 = vshrl.u32 %v634, 7
        %v636 = vsub.s32 0, %v635
        %v637 = vrot.slane %v616, %v636
        %v639 = vmul.f32 %v632, %v637
        %v641 = vlaneseq
        %v642 = vshrl.u32 %v641, 7
        %v643 = vsub.s32 0, %v642
        %v644 = vrot.slane %v617, %v643
        %v646 = vadd.f32 %v639, %v644
        %v647 = vpack.c.bf16 %v646, %v646
        %v648 = vld [vmem:[#allocation8] sm:$0xf]
        %v649 = vld [vmem:[#allocation8 + $0x4] sm:$0xf]
        %v650 = vld [vmem:[#allocation8 + $0x8] sm:$0xf]
        %v651 = vld [vmem:[#allocation8 + $0xc] sm:$0xf]
        %v652 = vld [vmem:[#allocation10] sm:$0x1]
        %v654 = vlaneseq
        %v655 = vshrl.u32 %v654, 7
        %v656 = vsub.s32 0, %v655
        %v657 = vrot.slane %v652, %v656
        %v663 = vunpack.c.l.b16 %v648
        %v664 = vunpack.c.l.b16 %v649
        %v665 = vunpack.c.l.b16 %v650
        %v666 = vunpack.c.l.b16 %v651
        %v667 = vpack.c.b16 %v664, %v663
        %v668 = vpack.c.b16 %v666, %v665
        %v672 = vsel %vm618, %v647, 0
        %674 = vmatprep.subr.bf16.mxu0 0
        %675 = vmatpush1.bf16.msra.mxu0 %v667
        %676 = vmatprep.subr.bf16.mxu0 0
        %677 = vmatpush1.bf16.msra.mxu0 %v668
        %678 = vmatprep.subr.bf16.mxu0 0
        %679 = vmatpush1.bf16.msra.mxu0 0
        %680 = vmatprep.subr.bf16.mxu0 0
        %681 = vmatpush1.bf16.msra.mxu0 0
        %682 = vmatprep.subr.bf16.mxu0 0
        %683 = vmatpush1.bf16.msra.mxu0 0
        %684 = vmatprep.subr.bf16.mxu0 0
        %685 = vmatpush1.bf16.msra.mxu0 0
        %686 = vmatprep.subr.bf16.mxu0 0
        %687 = vmatpush1.bf16.msra.mxu0 0
        %688 = vmatprep.subr.bf16.mxu0 0
        %689 = vmatpush1.bf16.msra.mxu0 0
        %690 = vmatprep.subr.bf16.mxu0 0
        %691 = vmatpush1.bf16.msra.mxu0 0
        %692 = vmatprep.subr.bf16.mxu0 0
        %693 = vmatpush1.bf16.msra.mxu0 0
        %694 = vmatprep.subr.bf16.mxu0 0
        %695 = vmatpush1.bf16.msra.mxu0 0
        %696 = vmatprep.subr.bf16.mxu0 0
        %697 = vmatpush1.bf16.msra.mxu0 0
        %698 = vmatprep.subr.bf16.mxu0 0
        %699 = vmatpush1.bf16.msra.mxu0 0
        %700 = vmatprep.subr.bf16.mxu0 0
        %701 = vmatpush1.bf16.msra.mxu0 0
        %702 = vmatprep.subr.bf16.mxu0 0
        %703 = vmatpush1.bf16.msra.mxu0 0
        %704 = vmatprep.subr.bf16.mxu0 0
        %705 = vmatpush1.bf16.msra.mxu0 0
        %706 = vmatprep.mubr.bf16.mxu0 0
        %707 = vmatmul.mubr.bf16.gmra.mrb[0].mxu0 %v672
        %v708 = vpop.f32.mrb[0].mxu0
        %v709 = vadd.f32 %v657, %v708
        %v710 = vpop.f32.mrb[0].mxu0
        %v711 = vpop.f32.mrb[0].mxu0
        %v712 = vpop.f32.mrb[0].mxu0
        %713 = vdwg.mxu0
        %715 = vrot.lane.b32.xlu0 %v709, 120
        %v716 = vpop.permute.xlu0 %715
        %718 = vrot.lane.b32.xlu0 %v709, 112
        %v719 = vpop.permute.xlu0 %718
        %721 = vrot.lane.b32.xlu0 %v709, 104
        %v722 = vpop.permute.xlu0 %721
        %v724 = vpack.c.bf16 %v709, %v709
        %v725 = vpack.c.bf16 %v716, %v716
        %v726 = vpack.c.bf16 %v719, %v719
        %v727 = vpack.c.bf16 %v722, %v722
        %729 = vrot.lane.b32.xlu0 %v724, 96
        %v730 = vpop.permute.xlu0 %729
        %vm731 = vcmask 64512
        %v733 = vsel %vm731, %v724, 0
        %v736 = vsel %vm731, %v730, 0
        %738 = vmatprep.subr.bf16.mxu0 0
        %739 = vmatpush1.bf16.xpose.msra.mxu0 %v736
        %740 = vmatprep.subr.bf16.mxu0 0
        %741 = vmatpush1.bf16.xpose.msra.mxu0 0
        %742 = vmatprep.subr.bf16.mxu0 0
        %743 = vmatpush1.bf16.xpose.msra.mxu0 0
        %744 = vmatprep.subr.bf16.mxu0 0
        %745 = vmatpush1.bf16.xpose.msra.mxu0 0
        %746 = vmatprep.subr.bf16.mxu0 0
        %747 = vmatpush1.bf16.xpose.msra.mxu0 0
        %748 = vmatprep.subr.bf16.mxu0 0
        %749 = vmatpush1.bf16.xpose.msra.mxu0 0
        %750 = vmatprep.subr.bf16.mxu0 0
        %751 = vmatpush1.bf16.xpose.msra.mxu0 0
        %752 = vmatprep.subr.bf16.mxu0 0
        %753 = vmatpush1.bf16.xpose.msra.mxu0 0
        %754 = vmatprep.subr.bf16.mxu0 0
        %755 = vmatpush1.bf16.xpose.msra.mxu0 0
        %756 = vmatprep.subr.bf16.mxu0 0
        %757 = vmatpush1.bf16.xpose.msra.mxu0 0
        %758 = vmatprep.subr.bf16.mxu0 0
        %759 = vmatpush1.bf16.xpose.msra.mxu0 0
        %760 = vmatprep.subr.bf16.mxu0 0
        %761 = vmatpush1.bf16.xpose.msra.mxu0 0
        %762 = vmatprep.subr.bf16.mxu0 0
        %763 = vmatpush1.bf16.xpose.msra.mxu0 0
        %764 = vmatprep.subr.bf16.mxu0 0
        %765 = vmatpush1.bf16.xpose.msra.mxu0 0
        %766 = vmatprep.subr.bf16.mxu0 0
        %767 = vmatpush1.bf16.xpose.msra.mxu0 0
        %768 = vmatprep.subr.bf16.mxu0 0
        %769 = vmatpush1.bf16.xpose.msra.mxu0 0
        %770 = vmatprep.mubr.bf16.mxu0 0
        %771 = vmatmul.mubr.bf16.gmra.mrb[0].mxu0 %v733
        %v772 = vpop.f32.mrb[0].mxu0
        %v773 = vadd.f32 0.0, %v772
        %v774 = vpop.f32.mrb[0].mxu0
        %v775 = vpop.f32.mrb[0].mxu0
        %v776 = vpop.f32.mrb[0].mxu0
        %777 = vdwg.mxu0
        %779 = vrot.lane.b32.xlu0 %v725, 96
        %v780 = vpop.permute.xlu0 %779
        %v782 = vsel %vm731, %v725, 0
        %v785 = vsel %vm731, %v780, 0
        %787 = vmatprep.subr.bf16.mxu0 0
        %788 = vmatpush1.bf16.xpose.msra.mxu0 %v785
        %789 = vmatprep.subr.bf16.mxu0 0
        %790 = vmatpush1.bf16.xpose.msra.mxu0 0
        %791 = vmatprep.subr.bf16.mxu0 0
        %792 = vmatpush1.bf16.xpose.msra.mxu0 0
        %793 = vmatprep.subr.bf16.mxu0 0
        %794 = vmatpush1.bf16.xpose.msra.mxu0 0
        %795 = vmatprep.subr.bf16.mxu0 0
        %796 = vmatpush1.bf16.xpose.msra.mxu0 0
        %797 = vmatprep.subr.bf16.mxu0 0
        %798 = vmatpush1.bf16.xpose.msra.mxu0 0
        %799 = vmatprep.subr.bf16.mxu0 0
        %800 = vmatpush1.bf16.xpose.msra.mxu0 0
        %801 = vmatprep.subr.bf16.mxu0 0
        %802 = vmatpush1.bf16.xpose.msra.mxu0 0
        %803 = vmatprep.subr.bf16.mxu0 0
        %804 = vmatpush1.bf16.xpose.msra.mxu0 0
        %805 = vmatprep.subr.bf16.mxu0 0
        %806 = vmatpush1.bf16.xpose.msra.mxu0 0
        %807 = vmatprep.subr.bf16.mxu0 0
        %808 = vmatpush1.bf16.xpose.msra.mxu0 0
        %809 = vmatprep.subr.bf16.mxu0 0
        %810 = vmatpush1.bf16.xpose.msra.mxu0 0
        %811 = vmatprep.subr.bf16.mxu0 0
        %812 = vmatpush1.bf16.xpose.msra.mxu0 0
        %813 = vmatprep.subr.bf16.mxu0 0
        %814 = vmatpush1.bf16.xpose.msra.mxu0 0
        %815 = vmatprep.subr.bf16.mxu0 0
        %816 = vmatpush1.bf16.xpose.msra.mxu0 0
        %817 = vmatprep.subr.bf16.mxu0 0
        %818 = vmatpush1.bf16.xpose.msra.mxu0 0
        %819 = vmatprep.mubr.bf16.mxu0 0
        %820 = vmatmul.mubr.bf16.gmra.mrb[0].mxu0 %v782
        %v821 = vpop.f32.mrb[0].mxu0
        %v822 = vadd.f32 0.0, %v821
        %v823 = vpop.f32.mrb[0].mxu0
        %v824 = vpop.f32.mrb[0].mxu0
        %v825 = vpop.f32.mrb[0].mxu0
        %826 = vdwg.mxu0
        %828 = vrot.lane.b32.xlu0 %v726, 96
        %v829 = vpop.permute.xlu0 %828
        %v831 = vsel %vm731, %v726, 0
        %v834 = vsel %vm731, %v829, 0
        %836 = vmatprep.subr.bf16.mxu0 0
        %837 = vmatpush1.bf16.xpose.msra.mxu0 %v834
        %838 = vmatprep.subr.bf16.mxu0 0
        %839 = vmatpush1.bf16.xpose.msra.mxu0 0
        %840 = vmatprep.subr.bf16.mxu0 0
        %841 = vmatpush1.bf16.xpose.msra.mxu0 0
        %842 = vmatprep.subr.bf16.mxu0 0
        %843 = vmatpush1.bf16.xpose.msra.mxu0 0
        %844 = vmatprep.subr.bf16.mxu0 0
        %845 = vmatpush1.bf16.xpose.msra.mxu0 0
        %846 = vmatprep.subr.bf16.mxu0 0
        %847 = vmatpush1.bf16.xpose.msra.mxu0 0
        %848 = vmatprep.subr.bf16.mxu0 0
        %849 = vmatpush1.bf16.xpose.msra.mxu0 0
        %850 = vmatprep.subr.bf16.mxu0 0
        %851 = vmatpush1.bf16.xpose.msra.mxu0 0
        %852 = vmatprep.subr.bf16.mxu0 0
        %853 = vmatpush1.bf16.xpose.msra.mxu0 0
        %854 = vmatprep.subr.bf16.mxu0 0
        %855 = vmatpush1.bf16.xpose.msra.mxu0 0
        %856 = vmatprep.subr.bf16.mxu0 0
        %857 = vmatpush1.bf16.xpose.msra.mxu0 0
        %858 = vmatprep.subr.bf16.mxu0 0
        %859 = vmatpush1.bf16.xpose.msra.mxu0 0
        %860 = vmatprep.subr.bf16.mxu0 0
        %861 = vmatpush1.bf16.xpose.msra.mxu0 0
        %862 = vmatprep.subr.bf16.mxu0 0
        %863 = vmatpush1.bf16.xpose.msra.mxu0 0
        %864 = vmatprep.subr.bf16.mxu0 0
        %865 = vmatpush1.bf16.xpose.msra.mxu0 0
        %866 = vmatprep.subr.bf16.mxu0 0
        %867 = vmatpush1.bf16.xpose.msra.mxu0 0
        %868 = vmatprep.mubr.bf16.mxu0 0
        %869 = vmatmul.mubr.bf16.gmra.mrb[0].mxu0 %v831
        %v870 = vpop.f32.mrb[0].mxu0
        %v871 = vadd.f32 0.0, %v870
        %v872 = vpop.f32.mrb[0].mxu0
        %v873 = vpop.f32.mrb[0].mxu0
        %v874 = vpop.f32.mrb[0].mxu0
        %875 = vdwg.mxu0
        %877 = vrot.lane.b32.xlu0 %v727, 96
        %v878 = vpop.permute.xlu0 %877
        %v880 = vsel %vm731, %v727, 0
        %v883 = vsel %vm731, %v878, 0
        %885 = vmatprep.subr.bf16.mxu0 0
        %886 = vmatpush1.bf16.xpose.msra.mxu0 %v883
        %887 = vmatprep.subr.bf16.mxu0 0
        %888 = vmatpush1.bf16.xpose.msra.mxu0 0
        %889 = vmatprep.subr.bf16.mxu0 0
        %890 = vmatpush1.bf16.xpose.msra.mxu0 0
        %891 = vmatprep.subr.bf16.mxu0 0
        %892 = vmatpush1.bf16.xpose.msra.mxu0 0
        %893 = vmatprep.subr.bf16.mxu0 0
        %894 = vmatpush1.bf16.xpose.msra.mxu0 0
        %895 = vmatprep.subr.bf16.mxu0 0
        %896 = vmatpush1.bf16.xpose.msra.mxu0 0
        %897 = vmatprep.subr.bf16.mxu0 0
        %898 = vmatpush1.bf16.xpose.msra.mxu0 0
        %899 = vmatprep.subr.bf16.mxu0 0
        %900 = vmatpush1.bf16.xpose.msra.mxu0 0
        %901 = vmatprep.subr.bf16.mxu0 0
        %902 = vmatpush1.bf16.xpose.msra.mxu0 0
        %903 = vmatprep.subr.bf16.mxu0 0
        %904 = vmatpush1.bf16.xpose.msra.mxu0 0
        %905 = vmatprep.subr.bf16.mxu0 0
        %906 = vmatpush1.bf16.xpose.msra.mxu0 0
        %907 = vmatprep.subr.bf16.mxu0 0
        %908 = vmatpush1.bf16.xpose.msra.mxu0 0
        %909 = vmatprep.subr.bf16.mxu0 0
        %910 = vmatpush1.bf16.xpose.msra.mxu0 0
        %911 = vmatprep.subr.bf16.mxu0 0
        %912 = vmatpush1.bf16.xpose.msra.mxu0 0
        %913 = vmatprep.subr.bf16.mxu0 0
        %914 = vmatpush1.bf16.xpose.msra.mxu0 0
        %915 = vmatprep.subr.bf16.mxu0 0
        %916 = vmatpush1.bf16.xpose.msra.mxu0 0
        %917 = vmatprep.mubr.bf16.mxu0 0
        %918 = vmatmul.mubr.bf16.gmra.mrb[0].mxu0 %v880
        %v919 = vpop.f32.mrb[0].mxu0
        %v920 = vadd.f32 0.0, %v919
        %v921 = vpop.f32.mrb[0].mxu0
        %v922 = vpop.f32.mrb[0].mxu0
        %v923 = vpop.f32.mrb[0].mxu0
        %924 = vdwg.mxu0
        %v925 = vsel %vm731, %v773, -inf
        %926 = vmax.xlane.f32.xlu0 %v925
        %v927 = vpop.xlane.xlu0 %926
        %v928 = vsel %vm731, %v822, -inf
        %929 = vmax.xlane.f32.xlu0 %v928
        %v930 = vpop.xlane.xlu0 %929
        %v931 = vsel %vm731, %v871, -inf
        %932 = vmax.xlane.f32.xlu0 %v931
        %v933 = vpop.xlane.xlu0 %932
        %v934 = vsel %vm731, %v920, -inf
        %935 = vmax.xlane.f32.xlu0 %v934
        %v936 = vpop.xlane.xlu0 %935
        %v937 = vsub.f32 %v773, %v927
        %v938 = vsub.f32 %v822, %v930
        %v939 = vsub.f32 %v871, %v933
        %v940 = vsub.f32 %v920, %v936
        %v941 = vmul.f32 %v937, 1.442695
        %v942 = vpow.pop %v941
        %v943 = vmul.f32 %v938, 1.442695
        %v944 = vpow.pop %v943
        %v945 = vmul.f32 %v939, 1.442695
        %v946 = vpow.pop %v945
        %v947 = vmul.f32 %v940, 1.442695
        %v948 = vpow.pop %v947
        %v949 = vsel %vm731, %v942, 0.0
        %950 = vadd.xlane.f32.xlu0 %v949
        %v951 = vpop.xlane.xlu0 %950
        %v952 = vsel %vm731, %v944, 0.0
        %953 = vadd.xlane.f32.xlu0 %v952
        %v954 = vpop.xlane.xlu0 %953
        %v955 = vsel %vm731, %v946, 0.0
        %956 = vadd.xlane.f32.xlu0 %v955
        %v957 = vpop.xlane.xlu0 %956
        %v958 = vsel %vm731, %v948, 0.0
        %959 = vadd.xlane.f32.xlu0 %v958
        %v960 = vpop.xlane.xlu0 %959
        %v961 = vrcp.pop %v951
        %v962 = vrcp.pop %v954
        %v963 = vrcp.pop %v957
        %v964 = vrcp.pop %v960
        %v965 = vmul.f32 %v942, %v961
        %v966 = vmul.f32 %v944, %v962
        %v967 = vmul.f32 %v946, %v963
        %v968 = vmul.f32 %v948, %v964
        %v969 = vpack.c.bf16 %v965, %v965
        %v970 = vpack.c.bf16 %v966, %v966
        %v971 = vpack.c.bf16 %v967, %v967
        %v972 = vpack.c.bf16 %v968, %v968
        %973 = vrot.lane.b32.xlu0 %v724, 64
        %v974 = vpop.permute.xlu0 %973
        %v976 = vsel %vm731, %v969, 0
        %vm978 = vcmask 1043456
        %v980 = vsel %vm978, %v974, 0
        %982 = vmatprep.subr.bf16.mxu0 0
        %983 = vmatpush1.bf16.msra.mxu0 %v980
        %984 = vmatprep.subr.bf16.mxu0 0
        %985 = vmatpush1.bf16.msra.mxu0 0
        %986 = vmatprep.subr.bf16.mxu0 0
        %987 = vmatpush1.bf16.msra.mxu0 0
        %988 = vmatprep.subr.bf16.mxu0 0
        %989 = vmatpush1.bf16.msra.mxu0 0
        %990 = vmatprep.subr.bf16.mxu0 0
        %991 = vmatpush1.bf16.msra.mxu0 0
        %992 = vmatprep.subr.bf16.mxu0 0
        %993 = vmatpush1.bf16.msra.mxu0 0
        %994 = vmatprep.subr.bf16.mxu0 0
        %995 = vmatpush1.bf16.msra.mxu0 0
        %996 = vmatprep.subr.bf16.mxu0 0
        %997 = vmatpush1.bf16.msra.mxu0 0
        %998 = vmatprep.subr.bf16.mxu0 0
        %999 = vmatpush1.bf16.msra.mxu0 0
        %1000 = vmatprep.subr.bf16.mxu0 0
        %1001 = vmatpush1.bf16.msra.mxu0 0
        %1002 = vmatprep.subr.bf16.mxu0 0
        %1003 = vmatpush1.bf16.msra.mxu0 0
        %1004 = vmatprep.subr.bf16.mxu0 0
        %1005 = vmatpush1.bf16.msra.mxu0 0
        %1006 = vmatprep.subr.bf16.mxu0 0
        %1007 = vmatpush1.bf16.msra.mxu0 0
        %1008 = vmatprep.subr.bf16.mxu0 0
        %1009 = vmatpush1.bf16.msra.mxu0 0
        %1010 = vmatprep.subr.bf16.mxu0 0
        %1011 = vmatpush1.bf16.msra.mxu0 0
        %1012 = vmatprep.subr.bf16.mxu0 0
        %1013 = vmatpush1.bf16.msra.mxu0 0
        %1014 = vmatprep.mubr.bf16.mxu0 0
        %1015 = vmatmul.mubr.bf16.gmra.mrb[0].mxu0 %v976
        %v1016 = vpop.f32.mrb[0].mxu0
        %v1017 = vadd.f32 0.0, %v1016
        %v1018 = vpop.f32.mrb[0].mxu0
        %v1019 = vpop.f32.mrb[0].mxu0
        %v1020 = vpop.f32.mrb[0].mxu0
        %1021 = vdwg.mxu0
        %1022 = vrot.lane.b32.xlu0 %v725, 64
        %v1023 = vpop.permute.xlu0 %1022
        %v1025 = vsel %vm731, %v970, 0
        %v1028 = vsel %vm978, %v1023, 0
        %1030 = vmatprep.subr.bf16.mxu0 0
        %1031 = vmatpush1.bf16.msra.mxu0 %v1028
        %1032 = vmatprep.subr.bf16.mxu0 0
        %1033 = vmatpush1.bf16.msra.mxu0 0
        %1034 = vmatprep.subr.bf16.mxu0 0
        %1035 = vmatpush1.bf16.msra.mxu0 0
        %1036 = vmatprep.subr.bf16.mxu0 0
        %1037 = vmatpush1.bf16.msra.mxu0 0
        %1038 = vmatprep.subr.bf16.mxu0 0
        %1039 = vmatpush1.bf16.msra.mxu0 0
        %1040 = vmatprep.subr.bf16.mxu0 0
        %1041 = vmatpush1.bf16.msra.mxu0 0
        %1042 = vmatprep.subr.bf16.mxu0 0
        %1043 = vmatpush1.bf16.msra.mxu0 0
        %1044 = vmatprep.subr.bf16.mxu0 0
        %1045 = vmatpush1.bf16.msra.mxu0 0
        %1046 = vmatprep.subr.bf16.mxu0 0
        %1047 = vmatpush1.bf16.msra.mxu0 0
        %1048 = vmatprep.subr.bf16.mxu0 0
        %1049 = vmatpush1.bf16.msra.mxu0 0
        %1050 = vmatprep.subr.bf16.mxu0 0
        %1051 = vmatpush1.bf16.msra.mxu0 0
        %1052 = vmatprep.subr.bf16.mxu0 0
        %1053 = vmatpush1.bf16.msra.mxu0 0
        %1054 = vmatprep.subr.bf16.mxu0 0
        %1055 = vmatpush1.bf16.msra.mxu0 0
        %1056 = vmatprep.subr.bf16.mxu0 0
        %1057 = vmatpush1.bf16.msra.mxu0 0
        %1058 = vmatprep.subr.bf16.mxu0 0
        %1059 = vmatpush1.bf16.msra.mxu0 0
        %1060 = vmatprep.subr.bf16.mxu0 0
        %1061 = vmatpush1.bf16.msra.mxu0 0
        %1062 = vmatprep.mubr.bf16.mxu0 0
        %1063 = vmatmul.mubr.bf16.gmra.mrb[0].mxu0 %v1025
        %v1064 = vpop.f32.mrb[0].mxu0
        %v1065 = vadd.f32 0.0, %v1064
        %v1066 = vpop.f32.mrb[0].mxu0
        %v1067 = vpop.f32.mrb[0].mxu0
        %v1068 = vpop.f32.mrb[0].mxu0
        %1069 = vdwg.mxu0
        %1070 = vrot.lane.b32.xlu0 %v726, 64
        %v1071 = vpop.permute.xlu0 %1070
        %v1073 = vsel %vm731, %v971, 0
        %v1076 = vsel %vm978, %v1071, 0
        %1078 = vmatprep.subr.bf16.mxu0 0
        %1079 = vmatpush1.bf16.msra.mxu0 %v1076
        %1080 = vmatprep.subr.bf16.mxu0 0
        %1081 = vmatpush1.bf16.msra.mxu0 0
        %1082 = vmatprep.subr.bf16.mxu0 0
        %1083 = vmatpush1.bf16.msra.mxu0 0
        %1084 = vmatprep.subr.bf16.mxu0 0
        %1085 = vmatpush1.bf16.msra.mxu0 0
        %1086 = vmatprep.subr.bf16.mxu0 0
        %1087 = vmatpush1.bf16.msra.mxu0 0
        %1088 = vmatprep.subr.bf16.mxu0 0
        %1089 = vmatpush1.bf16.msra.mxu0 0
        %1090 = vmatprep.subr.bf16.mxu0 0
        %1091 = vmatpush1.bf16.msra.mxu0 0
        %1092 = vmatprep.subr.bf16.mxu0 0
        %1093 = vmatpush1.bf16.msra.mxu0 0
        %1094 = vmatprep.subr.bf16.mxu0 0
        %1095 = vmatpush1.bf16.msra.mxu0 0
        %1096 = vmatprep.subr.bf16.mxu0 0
        %1097 = vmatpush1.bf16.msra.mxu0 0
        %1098 = vmatprep.subr.bf16.mxu0 0
        %1099 = vmatpush1.bf16.msra.mxu0 0
        %1100 = vmatprep.subr.bf16.mxu0 0
        %1101 = vmatpush1.bf16.msra.mxu0 0
        %1102 = vmatprep.subr.bf16.mxu0 0
        %1103 = vmatpush1.bf16.msra.mxu0 0
        %1104 = vmatprep.subr.bf16.mxu0 0
        %1105 = vmatpush1.bf16.msra.mxu0 0
        %1106 = vmatprep.subr.bf16.mxu0 0
        %1107 = vmatpush1.bf16.msra.mxu0 0
        %1108 = vmatprep.subr.bf16.mxu0 0
        %1109 = vmatpush1.bf16.msra.mxu0 0
        %1110 = vmatprep.mubr.bf16.mxu0 0
        %1111 = vmatmul.mubr.bf16.gmra.mrb[0].mxu0 %v1073
        %v1112 = vpop.f32.mrb[0].mxu0
        %v1113 = vadd.f32 0.0, %v1112
        %v1114 = vpop.f32.mrb[0].mxu0
        %v1115 = vpop.f32.mrb[0].mxu0
        %v1116 = vpop.f32.mrb[0].mxu0
        %1117 = vdwg.mxu0
        %1118 = vrot.lane.b32.xlu0 %v727, 64
        %v1119 = vpop.permute.xlu0 %1118
        %v1121 = vsel %vm731, %v972, 0
        %v1124 = vsel %vm978, %v1119, 0
        %1126 = vmatprep.subr.bf16.mxu0 0
        %1127 = vmatpush1.bf16.msra.mxu0 %v1124
        %1128 = vmatprep.subr.bf16.mxu0 0
        %1129 = vmatpush1.bf16.msra.mxu0 0
        %1130 = vmatprep.subr.bf16.mxu0 0
        %1131 = vmatpush1.bf16.msra.mxu0 0
        %1132 = vmatprep.subr.bf16.mxu0 0
        %1133 = vmatpush1.bf16.msra.mxu0 0
        %1134 = vmatprep.subr.bf16.mxu0 0
        %1135 = vmatpush1.bf16.msra.mxu0 0
        %1136 = vmatprep.subr.bf16.mxu0 0
        %1137 = vmatpush1.bf16.msra.mxu0 0
        %1138 = vmatprep.subr.bf16.mxu0 0
        %1139 = vmatpush1.bf16.msra.mxu0 0
        %1140 = vmatprep.subr.bf16.mxu0 0
        %1141 = vmatpush1.bf16.msra.mxu0 0
        %1142 = vmatprep.subr.bf16.mxu0 0
        %1143 = vmatpush1.bf16.msra.mxu0 0
        %1144 = vmatprep.subr.bf16.mxu0 0
        %1145 = vmatpush1.bf16.msra.mxu0 0
        %1146 = vmatprep.subr.bf16.mxu0 0
        %1147 = vmatpush1.bf16.msra.mxu0 0
        %1148 = vmatprep.subr.bf16.mxu0 0
        %1149 = vmatpush1.bf16.msra.mxu0 0
        %1150 = vmatprep.subr.bf16.mxu0 0
        %1151 = vmatpush1.bf16.msra.mxu0 0
        %1152 = vmatprep.subr.bf16.mxu0 0
        %1153 = vmatpush1.bf16.msra.mxu0 0
        %1154 = vmatprep.subr.bf16.mxu0 0
        %1155 = vmatpush1.bf16.msra.mxu0 0
        %1156 = vmatprep.subr.bf16.mxu0 0
        %1157 = vmatpush1.bf16.msra.mxu0 0
        %1158 = vmatprep.mubr.bf16.mxu0 0
        %1159 = vmatmul.mubr.bf16.gmra.mrb[0].mxu0 %v1121
        %v1160 = vpop.f32.mrb[0].mxu0
        %v1161 = vadd.f32 0.0, %v1160
        %v1162 = vpop.f32.mrb[0].mxu0
        %v1163 = vpop.f32.mrb[0].mxu0
        %v1164 = vpop.f32.mrb[0].mxu0
        %1165 = vdwg.mxu0
        %1167 = vrot.lane.b32.xlu0 %v1065, 8
        %v1168 = vpop.permute.xlu0 %1167
        %1171 = vrot.lane.b32.xlu0 %v1113, 16
        %v1172 = vpop.permute.xlu0 %1171
        %1175 = vrot.lane.b32.xlu0 %v1161, 24
        %v1176 = vpop.permute.xlu0 %1175
        %v1178 = vsel %vm731, %v1017, %v1168
        %vm1179 = vcmask 130048
        %v1180 = vsel %vm1179, %v1178, %v1172
        %vm1181 = vcmask 195584
        %v1182 = vsel %vm1181, %v1180, %v1176
        %v1183 = vpack.c.bf16 %v1182, %v1182
        %v1184 = vld [vmem:[#allocation11] sm:$0xf]
        %v1185 = vld [vmem:[#allocation11 + $0x4] sm:$0xf]
        %v1186 = vld [vmem:[#allocation11 + $0x8] sm:$0xf]
        %v1187 = vld [vmem:[#allocation11 + $0xc] sm:$0xf]
        %v1188 = vld [vmem:[#allocation13] sm:$0x1]
        %v1190 = vlaneseq
        %v1191 = vshrl.u32 %v1190, 7
        %v1192 = vsub.s32 0, %v1191
        %v1193 = vrot.slane %v1188, %v1192
        %v1199 = vunpack.c.l.b16 %v1184
        %v1200 = vunpack.c.l.b16 %v1185
        %v1201 = vunpack.c.l.b16 %v1186
        %v1202 = vunpack.c.l.b16 %v1187
        %v1203 = vpack.c.b16 %v1200, %v1199
        %v1204 = vpack.c.b16 %v1202, %v1201
        %v1208 = vsel %vm618, %v1183, 0
        %1210 = vmatprep.subr.bf16.mxu0 0
        %1211 = vmatpush1.bf16.msra.mxu0 %v1203
        %1212 = vmatprep.subr.bf16.mxu0 0
        %1213 = vmatpush1.bf16.msra.mxu0 %v1204
        %1214 = vmatprep.subr.bf16.mxu0 0
        %1215 = vmatpush1.bf16.msra.mxu0 0
        %1216 = vmatprep.subr.bf16.mxu0 0
        %1217 = vmatpush1.bf16.msra.mxu0 0
        %1218 = vmatprep.subr.bf16.mxu0 0
        %1219 = vmatpush1.bf16.msra.mxu0 0
        %1220 = vmatprep.subr.bf16.mxu0 0
        %1221 = vmatpush1.bf16.msra.mxu0 0
        %1222 = vmatprep.subr.bf16.mxu0 0
        %1223 = vmatpush1.bf16.msra.mxu0 0
        %1224 = vmatprep.subr.bf16.mxu0 0
        %1225 = vmatpush1.bf16.msra.mxu0 0
        %1226 = vmatprep.subr.bf16.mxu0 0
        %1227 = vmatpush1.bf16.msra.mxu0 0
        %1228 = vmatprep.subr.bf16.mxu0 0
        %1229 = vmatpush1.bf16.msra.mxu0 0
        %1230 = vmatprep.subr.bf16.mxu0 0
        %1231 = vmatpush1.bf16.msra.mxu0 0
        %1232 = vmatprep.subr.bf16.mxu0 0
        %1233 = vmatpush1.bf16.msra.mxu0 0
        %1234 = vmatprep.subr.bf16.mxu0 0
        %1235 = vmatpush1.bf16.msra.mxu0 0
        %1236 = vmatprep.subr.bf16.mxu0 0
        %1237 = vmatpush1.bf16.msra.mxu0 0
        %1238 = vmatprep.subr.bf16.mxu0 0
        %1239 = vmatpush1.bf16.msra.mxu0 0
        %1240 = vmatprep.subr.bf16.mxu0 0
        %1241 = vmatpush1.bf16.msra.mxu0 0
        %1242 = vmatprep.mubr.bf16.mxu0 0
        %1243 = vmatmul.mubr.bf16.gmra.mrb[0].mxu0 %v1208
        %v1244 = vpop.f32.mrb[0].mxu0
        %v1245 = vadd.f32 %v1193, %v1244
        %v1246 = vpop.f32.mrb[0].mxu0
        %v1247 = vpop.f32.mrb[0].mxu0
        %v1248 = vpop.f32.mrb[0].mxu0
        %1249 = vdwg.mxu0
        %v1250 = vadd.f32 %v615, %v1245
        %v1251 = vld [vmem:[#allocation14] sm:$0x1]
        %v1252 = vld [vmem:[#allocation16] sm:$0x1]
        %v1253 = vsel %vm618, %v1250, 0.0
        %1254 = vadd.xlane.f32.xlu0 %v1253
        %v1255 = vpop.xlane.xlu0 %1254
        %v1256 = vmul.f32 %v1255, %v622
        %v1257 = vsub.f32 %v1250, %v1256
        %v1258 = vmul.f32 %v1257, %v1257
        %v1259 = vsel %vm618, %v1258, 0.0
        %1260 = vadd.xlane.f32.xlu0 %v1259
        %v1261 = vpop.xlane.xlu0 %1260
        %v1262 = vmul.f32 %v1261, %v622
        %v1263 = vadd.f32 %v1262, 1e-05
        %v1264 = vrsqrt.pop %v1263
        %v1265 = vmul.f32 %v1257, %v1264
        %v1267 = vlaneseq
        %v1268 = vshrl.u32 %v1267, 7
        %v1269 = vsub.s32 0, %v1268
        %v1270 = vrot.slane %v1251, %v1269
        %v1272 = vmul.f32 %v1265, %v1270
        %v1274 = vlaneseq
        %v1275 = vshrl.u32 %v1274, 7
        %v1276 = vsub.s32 0, %v1275
        %v1277 = vrot.slane %v1252, %v1276
        %v1279 = vadd.f32 %v1272, %v1277
        %v1280 = vpack.c.bf16 %v1279, %v1279
        %v1281 = vld [vmem:[#allocation17] sm:$0xf]
        %v1282 = vld [vmem:[#allocation17 + $0x4] sm:$0xf]
        %v1283 = vld [vmem:[#allocation17 + $0x8] sm:$0xf]
        %v1284 = vld [vmem:[#allocation17 + $0xc] sm:$0xf]
        %v1285 = vld [vmem:[#allocation19] sm:$0x1]
        %v1287 = vlaneseq
        %v1288 = vshrl.u32 %v1287, 7
        %v1289 = vsub.s32 0, %v1288
        %v1290 = vrot.slane %v1285, %v1289
        %v1296 = vunpack.c.l.b16 %v1281
        %v1297 = vunpack.c.l.b16 %v1282
        %v1298 = vunpack.c.l.b16 %v1283
        %v1299 = vunpack.c.l.b16 %v1284
        %v1300 = vpack.c.b16 %v1297, %v1296
        %v1301 = vpack.c.b16 %v1299, %v1298
        %v1305 = vsel %vm618, %v1280, 0
        %1307 = vmatprep.subr.bf16.mxu0 0
        %1308 = vmatpush1.bf16.msra.mxu0 %v1300
        %1309 = vmatprep.subr.bf16.mxu0 0
        %1310 = vmatpush1.bf16.msra.mxu0 %v1301
        %1311 = vmatprep.subr.bf16.mxu0 0
        %1312 = vmatpush1.bf16.msra.mxu0 0
        %1313 = vmatprep.subr.bf16.mxu0 0
        %1314 = vmatpush1.bf16.msra.mxu0 0
        %1315 = vmatprep.subr.bf16.mxu0 0
        %1316 = vmatpush1.bf16.msra.mxu0 0
        %1317 = vmatprep.subr.bf16.mxu0 0
        %1318 = vmatpush1.bf16.msra.mxu0 0
        %1319 = vmatprep.subr.bf16.mxu0 0
        %1320 = vmatpush1.bf16.msra.mxu0 0
        %1321 = vmatprep.subr.bf16.mxu0 0
        %1322 = vmatpush1.bf16.msra.mxu0 0
        %1323 = vmatprep.subr.bf16.mxu0 0
        %1324 = vmatpush1.bf16.msra.mxu0 0
        %1325 = vmatprep.subr.bf16.mxu0 0
        %1326 = vmatpush1.bf16.msra.mxu0 0
        %1327 = vmatprep.subr.bf16.mxu0 0
        %1328 = vmatpush1.bf16.msra.mxu0 0
        %1329 = vmatprep.subr.bf16.mxu0 0
        %1330 = vmatpush1.bf16.msra.mxu0 0
        %1331 = vmatprep.subr.bf16.mxu0 0
        %1332 = vmatpush1.bf16.msra.mxu0 0
        %1333 = vmatprep.subr.bf16.mxu0 0
        %1334 = vmatpush1.bf16.msra.mxu0 0
        %1335 = vmatprep.subr.bf16.mxu0 0
        %1336 = vmatpush1.bf16.msra.mxu0 0
        %1337 = vmatprep.subr.bf16.mxu0 0
        %1338 = vmatpush1.bf16.msra.mxu0 0
        %1339 = vmatprep.mubr.bf16.mxu0 0
        %1340 = vmatmul.mubr.bf16.gmra.mrb[0].mxu0 %v1305
        %v1341 = vpop.f32.mrb[0].mxu0
        %v1342 = vadd.f32 %v1290, %v1341
        %v1343 = vpop.f32.mrb[0].mxu0
        %v1344 = vpop.f32.mrb[0].mxu0
        %v1345 = vpop.f32.mrb[0].mxu0
        %1346 = vdwg.mxu0
        %v1347 = vmax.f32 %v1342, 0.0
        %v1348 = vpack.c.bf16 %v1347, %v1347
        %v1349 = vld [vmem:[#allocation20] sm:$0xf]
        %v1350 = vld [vmem:[#allocation20 + $0x4] sm:$0xf]
        %v1351 = vld [vmem:[#allocation20 + $0x8] sm:$0xf]
        %v1352 = vld [vmem:[#allocation20 + $0xc] sm:$0xf]
        %v1353 = vld [vmem:[#allocation20 + $0x10] sm:$0xf]
        %v1354 = vld [vmem:[#allocation20 + $0x14] sm:$0xf]
        %v1355 = vld [vmem:[#allocation20 + $0x18] sm:$0xf]
        %v1356 = vld [vmem:[#allocation20 + $0x1c] sm:$0xf]
        %v1357 = vld [vmem:[#allocation20 + $0x20] sm:$0xf]
        %v1358 = vld [vmem:[#allocation20 + $0x24] sm:$0xf]
        %v1359 = vld [vmem:[#allocation20 + $0x28] sm:$0xf]
        %v1360 = vld [vmem:[#allocation20 + $0x2c] sm:$0xf]
        %v1361 = vld [vmem:[#allocation22] sm:$0x1]
        %v1363 = vlaneseq
        %v1364 = vshrl.u32 %v1363, 7
        %v1365 = vsub.s32 0, %v1364
        %v1366 = vrot.slane %v1361, %v1365
        %v1380 = vunpack.c.l.b16 %v1349
        %v1381 = vunpack.c.l.b16 %v1350
        %v1382 = vunpack.c.l.b16 %v1351
        %v1383 = vunpack.c.l.b16 %v1352
        %v1384 = vunpack.c.l.b16 %v1353
        %v1385 = vunpack.c.l.b16 %v1354
        %v1386 = vunpack.c.l.b16 %v1355
        %v1387 = vunpack.c.l.b16 %v1356
        %v1388 = vunpack.c.l.b16 %v1357
        %v1389 = vunpack.c.l.b16 %v1358
        %v1390 = vunpack.c.l.b16 %v1359
        %v1391 = vunpack.c.l.b16 %v1360
        %v1392 = vpack.c.b16 %v1381, %v1380
        %v1393 = vpack.c.b16 %v1383, %v1382
        %v1394 = vpack.c.b16 %v1385, %v1384
        %v1395 = vpack.c.b16 %v1387, %v1386
        %v1396 = vpack.c.b16 %v1389, %v1388
        %v1397 = vpack.c.b16 %v1391, %v1390
        %vm1404 = vcmask 785408
        %v1406 = vsel %vm1404, %v1348, 0
        %1408 = vmatprep.subr.bf16.mxu0 0
        %1409 = vmatpush1.bf16.msra.mxu0 %v1392
        %1410 = vmatprep.subr.bf16.mxu0 0
        %1411 = vmatpush1.bf16.msra.mxu0 %v1393
        %1412 = vmatprep.subr.bf16.mxu0 0
        %1413 = vmatpush1.bf16.msra.mxu0 %v1394
        %1414 = vmatprep.subr.bf16.mxu0 0
        %1415 = vmatpush1.bf16.msra.mxu0 %v1395
        %1416 = vmatprep.subr.bf16.mxu0 0
        %1417 = vmatpush1.bf16.msra.mxu0 %v1396
        %1418 = vmatprep.subr.bf16.mxu0 0
        %1419 = vmatpush1.bf16.msra.mxu0 %v1397
        %1420 = vmatprep.subr.bf16.mxu0 0
        %1421 = vmatpush1.bf16.msra.mxu0 0
        %1422 = vmatprep.subr.bf16.mxu0 0
        %1423 = vmatpush1.bf16.msra.mxu0 0
        %1424 = vmatprep.subr.bf16.mxu0 0
        %1425 = vmatpush1.bf16.msra.mxu0 0
        %1426 = vmatprep.subr.bf16.mxu0 0
        %1427 = vmatpush1.bf16.msra.mxu0 0
        %1428 = vmatprep.subr.bf16.mxu0 0
        %1429 = vmatpush1.bf16.msra.mxu0 0
        %1430 = vmatprep.subr.bf16.mxu0 0
        %1431 = vmatpush1.bf16.msra.mxu0 0
        %1432 = vmatprep.subr.bf16.mxu0 0
        %1433 = vmatpush1.bf16.msra.mxu0 0
        %1434 = vmatprep.subr.bf16.mxu0 0
        %1435 = vmatpush1.bf16.msra.mxu0 0
        %1436 = vmatprep.subr.bf16.mxu0 0
        %1437 = vmatpush1.bf16.msra.mxu0 0
        %1438 = vmatprep.subr.bf16.mxu0 0
        %1439 = vmatpush1.bf16.msra.mxu0 0
        %1440 = vmatprep.mubr.bf16.mxu0 0
        %1441 = vmatmul.mubr.bf16.gmra.mrb[0].mxu0 %v1406
        %v1442 = vpop.f32.mrb[0].mxu0
        %v1443 = vadd.f32 %v1366, %v1442
        %v1444 = vpop.f32.mrb[0].mxu0
        %v1445 = vpop.f32.mrb[0].mxu0
        %v1446 = vpop.f32.mrb[0].mxu0
        %1447 = vdwg.mxu0
        %v1448 = vadd.f32 %v1250, %v1443
        %1449 = vst.msk [vmem:[%s613] sm:$0xff] %vm618, %v1448
        %s1450 = sand.u32 %s322, 1
        %s1451 = scalar_lea.sflag [#allocation4], %s1450
        %s1452 = sand.u32 %s322, 1
        %s1453 = smul.addr %s1452, 8
        %s1454 = scalar_lea.vmem [#allocation23], %s1453
        // Predicated region
        $region125: #{tpu_custom_call.1} parent=71 // pred_check
          %p1455 = pneg %p332
        $region126: #{tpu_custom_call.1} parent=71 // pred_check_branch
          %1457 = sbr.rel (%p1455) target = $region128
        $region127: #{tpu_custom_call.1} parent=71 // pred_region
          %s1459 = ssub.s32 128, 128
          %1460 = vsyncadd %s1451, %s1459
          %s1461 = smul.addr %s36, 128
          %s1462 = scalar_lea.hbm %s13, %s1461
          %s1464 = sshll.u32 %s1454, 4
          %s1465 = int_to_ptr.vmem [resolvable:$true] %s1464
          %1467 = dma.vmem_to_hbm [thread:$0]  %s1465, 128, %s1462, %s1451
        $region128: #{tpu_custom_call.1} parent=71 // pred_fallthru
          _
      $region72: #{tpu_custom_call.1} parent=5 // pred_fallthru
        _
      %p1468 = scmp.le.s32.totalorder 2, %s31
      // Predicated region
      $region129: #{tpu_custom_call.1} parent=5 // pred_check
        %p1469 = pneg %p1468
      $region130: #{tpu_custom_call.1} parent=5 // pred_check_branch
        %1471 = sbr.rel (%p1469) target = $region132
      $region131: #{tpu_custom_call.1} parent=5 // pred_region
        %s1472 = ssub.s32 %s31, 2
        // Predicated region
        $region133: #{tpu_custom_call.1} parent=131 // pred_check
          %p1473 = pneg %p338
        $region134: #{tpu_custom_call.1} parent=131 // pred_check_branch
          %1475 = sbr.rel (%p1473) target = $region136
        $region135: #{tpu_custom_call.1} parent=131 // pred_region
          %s1476 = sand.u32 %s323, 1
          %s1477 = scalar_lea.sflag [#allocation4], %s1476
          %s1478 = sand.u32 %s323, 1
          %s1479 = smul.addr %s1478, 8
          %s1480 = scalar_lea.vmem [#allocation23], %s1479
          %1481 = dma.done %s1477, 128
        $region136: #{tpu_custom_call.1} parent=131 // pred_fallthru
          _
      $region132: #{tpu_custom_call.1} parent=5 // pred_fallthru
        _
    $region6: #{tpu_custom_call.1} parent=1 // loop_footer
      %s35 = sadd.s32 1, %s31
    $region7: #{tpu_custom_call.1} parent=1 // loop_footer_branch
      %30 = sbr.rel target = $region3
    $region8: #{tpu_custom_call.1} parent=1 // loop_exit
      _
    %1482 = vsyncpa [#allocation3], 1
    %s1483 = scalar_lea.sflag [#allocation3], 1
    %1484 = vsyncpa %s1483, 1
    %1485 = vsyncpa [#allocation6], 1
    %1486 = vsyncpa [#allocation9], 1
    %1487 = vsyncpa [#allocation12], 1
    %1488 = vsyncpa [#allocation15], 1
    %1489 = vsyncpa [#allocation18], 1
    %1490 = vsyncpa [#allocation21], 1
    %1491 = vsyncpa [#allocation4], 1
    %s1492 = scalar_lea.sflag [#allocation4], 1
    %1493 = vsyncpa %s1492, 1

</llo_original>
